<compile_context>
chip_gen: v7x
topology: tpu7x:2x2x1
jax: 0.10.0
libtpu: 0.0.40
codegen_flags: <defaults>
</compile_context>

<pallas_src>
import functools

import jax
import jax.numpy as jnp
from jax import lax
from jax.experimental import pallas as pl
from jax.experimental.pallas import tpu as pltpu

BN_EPS = 1e-5


# ----------------------------- kernel helpers ------------------------------ #
def _prelu(v, a):
    return jnp.where(v > 0, v, a * v)


def _bn_onepass(x2d, fold_ref, g_ref, b_ref, inv_count):
    """Training-mode BatchNorm2d on a (rows, W*C) lane-dense slab, single pass.

    fold_ref is a (W*C, W*C) f32 indicator F[i, j] = 1 iff i%C == j%C: one small
    MXU matmul folds the per-(w, c) partial sums into per-channel stats AND
    broadcasts them back to the (w, c) lane layout.  inv_count = 1/(N*H*W).
    """
    s = jnp.sum(x2d, axis=0, keepdims=True)             # (1, WC)
    s2 = jnp.sum(x2d * x2d, axis=0, keepdims=True)      # (1, WC)
    fold = fold_ref[...]
    mu = jnp.dot(s, fold, preferred_element_type=jnp.float32) * inv_count
    ex2 = jnp.dot(s2, fold, preferred_element_type=jnp.float32) * inv_count
    var = jnp.maximum(ex2 - mu * mu, 0.0)               # clamp: single-pass var can round < 0
    inv = lax.rsqrt(var + BN_EPS)
    return (x2d - mu) * (inv * g_ref[...]) + b_ref[...]


def _conv3x3(y2d, w_ref, top_mask, bot_mask):
    """3x3 conv, stride 1, pad 1, on a lane-dense (N*H, W*Cin) activation value.

    w_ref: (3, W*Cin, W*Cout) bf16 — per-kh block-tridiagonal matrices that fold
    the kw shift and the width zero-padding into the weights.  The kh (height)
    shift is applied on the matmul OUTPUTS with pltpu.roll (sublane rotation)
    plus a (rows, 1) boundary mask, so no padded scratch, no activation store,
    and no per-tap slice copies are needed.  Returns (N*H, W*Cout) f32.
    """
    rows = y2d.shape[0]
    lhs = y2d.astype(jnp.bfloat16)                      # one cast, reused by all 3 taps
    p0 = jnp.dot(lhs, w_ref[0], preferred_element_type=jnp.float32)
    p1 = jnp.dot(lhs, w_ref[1], preferred_element_type=jnp.float32)
    p2 = jnp.dot(lhs, w_ref[2], preferred_element_type=jnp.float32)
    top = pltpu.roll(p0, shift=1, axis=0) * top_mask            # in[i-1] @ W[kh=0]
    bot = pltpu.roll(p2, shift=rows - 1, axis=0) * bot_mask     # in[i+1] @ W[kh=2]
    return p1 + top + bot


# --------------------------------- kernel ---------------------------------- #
def residual_block_kernel(*refs, has_projection, w_spatial):
    if has_projection:
        (x_ref, tm_ref, bm_ref,
         g1_ref, b1_ref, f1_ref, w1_ref,
         g2_ref, b2_ref, f2_ref, w2_ref,
         fc1w_ref, fc1b_ref, fc2w_ref, fc2b_ref,
         wsc_ref, gsc_ref, bsc_ref,
         a_main_ref, a_se_ref, out_ref) = refs
    else:
        (x_ref, tm_ref, bm_ref,
         g1_ref, b1_ref, f1_ref, w1_ref,
         g2_ref, b2_ref, f2_ref, w2_ref,
         fc1w_ref, fc1b_ref, fc2w_ref, fc2b_ref,
         a_main_ref, a_se_ref, out_ref) = refs

    n, h, wcin = x_ref.shape
    wcout = out_ref.shape[-1]
    rows = n * h
    inv_bn = 1.0 / float(rows * w_spatial)      # 1/(N*H*W): BN count
    inv_pool = 1.0 / float(h * w_spatial)       # 1/(H*W):   SE global avg pool

    a_main = a_main_ref[0, 0]                   # shared PReLU param (self.relu, used twice)
    a_se = a_se_ref[0, 0]                       # PReLU inside the SE block

    top_mask = tm_ref[...]                      # (rows, 1) f32: 0 at image-row 0
    bot_mask = bm_ref[...]                      # (rows, 1) f32: 0 at image-row h-1

    x = x_ref[...].astype(jnp.float32).reshape(rows, wcin)

    # ---- shortcut kept as a value: single fused store at the end (no RMW) ----
    if has_projection:
        sc = jnp.dot(x.astype(jnp.bfloat16), wsc_ref[...],
                     preferred_element_type=jnp.float32)            # (rows, wcout)
        sc = _bn_onepass(sc, f2_ref, gsc_ref, bsc_ref, inv_bn)
    else:
        sc = x                                                      # identity (Cin == Cout)

    # ---- bn1 + PReLU ----
    y = _prelu(_bn_onepass(x, f1_ref, g1_ref, b1_ref, inv_bn), a_main)

    # ---- conv1 (3x3, stride 1, pad 1) ----
    c1 = _conv3x3(y, w1_ref, top_mask, bot_mask)                    # (rows, wcout) f32

    # ---- bn2 + PReLU (same PReLU parameter: self.relu is reused) ----
    y2 = _prelu(_bn_onepass(c1, f2_ref, g2_ref, b2_ref, inv_bn), a_main)

    # ---- conv2 (3x3, stride 1, pad 1) ----
    c2 = _conv3x3(y2, w2_ref, top_mask, bot_mask)                   # (rows, wcout) f32

    # ---- SE: global avg pool -> fc1 -> PReLU -> fc2 -> sigmoid -> scale ----
    c2_3d = c2.reshape(n, h, wcout)
    rowsum = jnp.sum(c2_3d, axis=1)                                 # (n, wcout)
    hid = jnp.dot(rowsum, fc1w_ref[...],
                  preferred_element_type=jnp.float32) * inv_pool + fc1b_ref[...]
    hid = _prelu(hid, a_se)
    gate = jax.nn.sigmoid(
        jnp.dot(hid, fc2w_ref[...],
                preferred_element_type=jnp.float32) + fc2b_ref[...])
    se = c2_3d * gate[:, None, :]

    # ---- residual add, single store ----
    out_ref[...] = (se + sc.reshape(n, h, wcout)).astype(out_ref.dtype)


# -------------------- one-time parameter preparation ------------------------ #
def _fold_conv3x3(w_oihw, w_spatial):
    """(Cout, Cin, 3, 3) -> (3, W*Cin, W*Cout).

    For each kh row tap, a block-tridiagonal matrix whose (w_in, w_out) block is
    W[kh, w_in - w_out + 1] (zero when |w_in - w_out| > 1), so the kw shift and
    the width zero-padding are baked into the weights.
    """
    cin, cout = w_oihw.shape[1], w_oihw.shape[0]
    wgt = jnp.transpose(w_oihw, (2, 3, 1, 0))                       # (kh, kw, ci, co)
    kw_idx = (jnp.arange(w_spatial)[:, None]                        # w_in
              - jnp.arange(w_spatial)[None, :] + 1)                 # w_out
    valid = ((kw_idx >= 0) & (kw_idx <= 2)).astype(wgt.dtype)
    kw_c = jnp.clip(kw_idx, 0, 2)
    blocks = wgt[:, kw_c] * valid[None, :, :, None, None]           # (3, W, W, ci, co)
    blocks = jnp.transpose(blocks, (0, 1, 3, 2, 4))                 # (3, w_in, ci, w_out, co)
    return blocks.reshape(3, w_spatial * cin, w_spatial * cout)


def _channel_fold_matrix(w_spatial, c):
    """F[w*C+c, w'*C+c'] = 1 iff c == c' (per-channel fold + re-broadcast)."""
    lane = jnp.arange(w_spatial * c)
    return ((lane[:, None] % c) == (lane[None, :] % c)).astype(jnp.float32)


def _tile_lanes(v, w_spatial):
    """(C,) -> (1, W*C) with lane layout [w*C + c] = v[c]."""
    return jnp.tile(v.astype(jnp.float32), w_spatial).reshape(1, -1)


def prepare_residual_block_params(params, *, width, has_projection):
    """Fold / tile all weights ONCE.  Result is batch-size independent."""
    cin = params["conv1_w"].shape[1]
    cout = params["conv1_w"].shape[0]
    cr = params["fc1_w"].shape[0]
    ww = width
    prep = {
        # conv weights with kw shift / width padding folded; bf16 MXU operands
        "w1": _fold_conv3x3(params["conv1_w"].astype(jnp.float32), ww).astype(jnp.bfloat16),
        "w2": _fold_conv3x3(params["conv2_w"].astype(jnp.float32), ww).astype(jnp.bfloat16),
        # BN params tiled to the (w, c) lane layout; fold matrices for batch stats
        "g1": _tile_lanes(params["bn1_g"], ww),
        "b1": _tile_lanes(params["bn1_b"], ww),
        "g2": _tile_lanes(params["bn2_g"], ww),
        "b2": _tile_lanes(params["bn2_b"], ww),
        "f1": _channel_fold_matrix(ww, cin),
        "f2": _channel_fold_matrix(ww, cout),
        # SE weights broadcast to the lane layout (pool scale applied in-kernel)
        "fc1w": jnp.tile(params["fc1_w"].astype(jnp.float32).T, (ww, 1)),   # (W*Cout, Cr)
        "fc1b": params["fc1_b"].reshape(1, cr).astype(jnp.float32),
        "fc2w": jnp.tile(params["fc2_w"].astype(jnp.float32).T, (1, ww)),   # (Cr, W*Cout)
        "fc2b": _tile_lanes(params["fc2_b"], ww),
        # PReLU scalars (SMEM)
        "a_main": params["prelu_a"].reshape(1, 1).astype(jnp.float32),
        "a_se": params["se_prelu_a"].reshape(1, 1).astype(jnp.float32),
    }
    if has_projection:
        prep["wsc"] = jnp.kron(jnp.eye(ww, dtype=jnp.float32),
                               params["sc_conv_w"].reshape(cout, cin).T).astype(jnp.bfloat16)
        prep["gsc"] = _tile_lanes(params["sc_bn_g"], ww)
        prep["bsc"] = _tile_lanes(params["sc_bn_b"], ww)
    return prep


# ------------------------ lane-dense fused forward -------------------------- #
@functools.partial(jax.jit, static_argnames=("width", "has_projection"))
def residual_block_forward_lane(x_lane, prep, *, width, has_projection):
    """x_lane: (N, H, W*Cin) lane-dense activations -> (N, H, W*Cout) f32."""
    n, hh, wcin = x_lane.shape
    wcout = prep["g2"].shape[-1]
    if not has_projection:
        assert wcin == wcout, "identity shortcut requires Cin == Cout"

    # boundary masks for the kh-shifted conv taps (constant-folded under jit)
    rows = n * hh
    row_in_img = jnp.arange(rows) % hh
    top_mask = (row_in_img >= 1).astype(jnp.float32).reshape(rows, 1)
    bot_mask = (row_in_img <= hh - 2).astype(jnp.float32).reshape(rows, 1)

    args = [x_lane, top_mask, bot_mask,
            prep["g1"], prep["b1"], prep["f1"], prep["w1"],
            prep["g2"], prep["b2"], prep["f2"], prep["w2"],
            prep["fc1w"], prep["fc1b"], prep["fc2w"], prep["fc2b"]]
    if has_projection:
        args += [prep["wsc"], prep["gsc"], prep["bsc"]]
    args += [prep["a_main"], prep["a_se"]]

    vmem = pl.BlockSpec(memory_space=pltpu.MemorySpace.VMEM)
    smem = pl.BlockSpec(memory_space=pltpu.MemorySpace.SMEM)
    in_specs = [vmem] * (len(args) - 2) + [smem, smem]

    # VMEM limit sized from the actual resident set (stays under v7x's 64 MiB)
    in_bytes = sum(int(a.size) * a.dtype.itemsize for a in args)
    out_bytes = rows * wcout * 4
    act_bytes = rows * max(wcin, wcout) * 4
    vmem_limit = int(min(max(2 * (in_bytes + out_bytes) + 24 * act_bytes + (2 << 20),
                             16 << 20), 48 << 20))

    kernel = functools.partial(residual_block_kernel,
                               has_projection=has_projection, w_spatial=width)
    return pl.pallas_call(
        kernel,
        out_shape=jax.ShapeDtypeStruct((n, hh, wcout), jnp.float32),
        in_specs=in_specs,
        out_specs=vmem,
        compiler_params=pltpu.CompilerParams(vmem_limit_bytes=vmem_limit),
    )(*args)


# --------------------- NCHW adapters (demo / interop glue) ------------------ #
def nchw_to_lane(x_nchw):
    n, c, h, w = x_nchw.shape
    return jnp.transpose(x_nchw, (0, 2, 3, 1)).reshape(n, h, w * c)


def lane_to_nchw(x_lane, c):
    n, h, wc = x_lane.shape
    w = wc // c
    return jnp.transpose(x_lane.reshape(n, h, w, c), (0, 3, 1, 2))


# ------------------------ pure-JAX reference (NCHW) ------------------------- #
def reference_forward(x, params, *, has_projection):
    def bn(x, g, b):
        mu = x.mean(axis=(0, 2, 3), keepdims=True)
        var = ((x - mu) ** 2).mean(axis=(0, 2, 3), keepdims=True)
        return (x - mu) / jnp.sqrt(var + BN_EPS) * g.reshape(1, -1, 1, 1) \
            + b.reshape(1, -1, 1, 1)

    def prelu(x, a):
        return jnp.where(x > 0, x, a * x)

    def conv(x, w, stride, pad):
        return jax.lax.conv_general_dilated(
            x, w, window_strides=(stride, stride),
            padding=((pad, pad), (pad, pad)),
            dimension_numbers=("NCHW", "OIHW", "NCHW"))

    a = params["prelu_a"][0]
    out = prelu(bn(x, params["bn1_g"], params["bn1_b"]), a)
    out = conv(out, params["conv1_w"], 1, 1)
    out = prelu(bn(out, params["bn2_g"], params["bn2_b"]), a)
    out = conv(out, params["conv2_w"], 1, 1)
    b_, c_, _, _ = out.shape
    y = out.mean(axis=(2, 3))
    y = y @ params["fc1_w"].T + params["fc1_b"]
    y = prelu(y, params["se_prelu_a"][0])
    y = jax.nn.sigmoid(y @ params["fc2_w"].T + params["fc2_b"])
    out = out * y.reshape(b_, c_, 1, 1)
    if has_projection:
        sc = conv(x, params["sc_conv_w"], 1, 0)
        sc = bn(sc, params["sc_bn_g"], params["sc_bn_b"])
    else:
        sc = x
    return out + sc


# ---------------------------------- demo ------------------------------------ #
if __name__ == "__main__":
    key = jax.random.PRNGKey(0)
    N, Cin, Cout, H, W = 2, 16, 32, 8, 8            # 8x8 chess-board spatial
    Cr = Cout // 16                                  # SE reduction

    ks = jax.random.split(key, 14)
    params = {
        "bn1_g": jax.random.normal(ks[0], (Cin,)) * 0.1 + 1.0,
        "bn1_b": jax.random.normal(ks[1], (Cin,)) * 0.1,
        "conv1_w": jax.random.normal(ks[2], (Cout, Cin, 3, 3)) * 0.1,
        "bn2_g": jax.random.normal(ks[3], (Cout,)) * 0.1 + 1.0,
        "bn2_b": jax.random.normal(ks[4], (Cout,)) * 0.1,
        "conv2_w": jax.random.normal(ks[5], (Cout, Cout, 3, 3)) * 0.1,
        "fc1_w": jax.random.normal(ks[6], (Cr, Cout)) * 0.2,
        "fc1_b": jax.random.normal(ks[7], (Cr,)) * 0.1,
        "fc2_w": jax.random.normal(ks[8], (Cout, Cr)) * 0.2,
        "fc2_b": jax.random.normal(ks[9], (Cout,)) * 0.1,
        "sc_conv_w": jax.random.normal(ks[10], (Cout, Cin, 1, 1)) * 0.2,
        "sc_bn_g": jax.random.normal(ks[11], (Cout,)) * 0.1 + 1.0,
        "sc_bn_b": jax.random.normal(ks[12], (Cout,)) * 0.1,
        "prelu_a": jnp.full((1,), 0.25, jnp.float32),     # shared self.relu
        "se_prelu_a": jnp.full((1,), 0.25, jnp.float32),  # SE fc PReLU
    }
    params = {k: v.astype(jnp.float32) for k, v in params.items()}
    x = jax.random.normal(ks[13], (N, Cin, H, W), jnp.float32)

    # in_channels != out_channels, downsample=False -> projection shortcut, stride 1
    prep = prepare_residual_block_params(params, width=W, has_projection=True)  # once
    x_lane = nchw_to_lane(x)                            # demo glue only: blocks chain lane-dense
    out_lane = residual_block_forward_lane(x_lane, prep, width=W, has_projection=True)
    out_lane = jax.block_until_ready(out_lane)
    out = lane_to_nchw(out_lane, Cout)                  # demo glue for NCHW reference compare

    ref = reference_forward(x, params, has_projection=True)
    err = float(jnp.max(jnp.abs(out - ref)))

    assert out.shape == (N, Cout, H, W)
    assert bool(jnp.all(jnp.isfinite(out)))
    # conv / shortcut matmuls run with bf16 operands (f32 accumulation)
    assert err < 5e-2, f"max abs err vs f32 reference: {err}"
    print("KERNEL_OK")
</pallas_src>

<mosaic_0001>
module attributes {stable_mosaic.version = 11 : i64} {
  func.func @residual_block_kernel(%arg0: memref<2x8x128xf32, #tpu.memory_space<vmem>>, %arg1: memref<16x1xf32, #tpu.memory_space<vmem>>, %arg2: memref<16x1xf32, #tpu.memory_space<vmem>>, %arg3: memref<1x128xf32, #tpu.memory_space<vmem>>, %arg4: memref<1x128xf32, #tpu.memory_space<vmem>>, %arg5: memref<128x128xf32, #tpu.memory_space<vmem>>, %arg6: memref<3x128x256xbf16, #tpu.memory_space<vmem>>, %arg7: memref<1x256xf32, #tpu.memory_space<vmem>>, %arg8: memref<1x256xf32, #tpu.memory_space<vmem>>, %arg9: memref<256x256xf32, #tpu.memory_space<vmem>>, %arg10: memref<3x256x256xbf16, #tpu.memory_space<vmem>>, %arg11: memref<256x2xf32, #tpu.memory_space<vmem>>, %arg12: memref<1x2xf32, #tpu.memory_space<vmem>>, %arg13: memref<2x256xf32, #tpu.memory_space<vmem>>, %arg14: memref<1x256xf32, #tpu.memory_space<vmem>>, %arg15: memref<128x256xbf16, #tpu.memory_space<vmem>>, %arg16: memref<1x256xf32, #tpu.memory_space<vmem>>, %arg17: memref<1x256xf32, #tpu.memory_space<vmem>>, %arg18: memref<1x1xf32, #tpu.memory_space<smem>>, %arg19: memref<1x1xf32, #tpu.memory_space<smem>>, %arg20: memref<2x8x256xf32, #tpu.memory_space<vmem>>) attributes {dimension_semantics = [], scalar_prefetch = 0 : i64, scratch_operands = 0 : i64, tpu.core_type = #tpu.core_type<tc>} {
    %c0 = arith.constant 0 : index
    %c0_0 = arith.constant 0 : index
    %0 = memref.load %arg18[%c0, %c0_0] : memref<1x1xf32, #tpu.memory_space<smem>>
    %c0_1 = arith.constant 0 : index
    %c0_2 = arith.constant 0 : index
    %1 = memref.load %arg19[%c0_1, %c0_2] : memref<1x1xf32, #tpu.memory_space<smem>>
    %c0_3 = arith.constant 0 : index
    %c0_4 = arith.constant 0 : index
    %2 = vector.load %arg1[%c0_3, %c0_4] : memref<16x1xf32, #tpu.memory_space<vmem>>, vector<16x1xf32>
    %c0_5 = arith.constant 0 : index
    %c0_6 = arith.constant 0 : index
    %3 = vector.load %arg2[%c0_5, %c0_6] : memref<16x1xf32, #tpu.memory_space<vmem>>, vector<16x1xf32>
    %c0_7 = arith.constant 0 : index
    %c0_8 = arith.constant 0 : index
    %c0_9 = arith.constant 0 : index
    %4 = vector.load %arg0[%c0_7, %c0_8, %c0_9] : memref<2x8x128xf32, #tpu.memory_space<vmem>>, vector<2x8x128xf32>
    %5 = vector.shape_cast %4 : vector<2x8x128xf32> to vector<16x128xf32>
    %6 = arith.truncf %5 : vector<16x128xf32> to vector<16x128xbf16>
    %c0_10 = arith.constant 0 : index
    %c0_11 = arith.constant 0 : index
    %7 = vector.load %arg15[%c0_10, %c0_11] : memref<128x256xbf16, #tpu.memory_space<vmem>>, vector<128x256xbf16>
    %cst = arith.constant dense<0.000000e+00> : vector<16x256xf32>
    %8 = tpu.matmul %6, %7, %cst {dimension_numbers = #tpu.dot_dimension_numbers<[1], [0], [0], [1], [0, 0, 1, 1], [], []>} : vector<16x128xbf16>, vector<128x256xbf16>, vector<16x256xf32> -> vector<16x256xf32>
    %cst_12 = arith.constant dense<0.000000e+00> : vector<256xf32>
    %9 = vector.multi_reduction <add>, %8, %cst_12 [0] : vector<16x256xf32> to vector<256xf32>
    %10 = vector.shape_cast %9 : vector<256xf32> to vector<1x256xf32>
    %11 = arith.mulf %8, %8 : vector<16x256xf32>
    %cst_13 = arith.constant dense<0.000000e+00> : vector<256xf32>
    %12 = vector.multi_reduction <add>, %11, %cst_13 [0] : vector<16x256xf32> to vector<256xf32>
    %13 = vector.shape_cast %12 : vector<256xf32> to vector<1x256xf32>
    %c0_14 = arith.constant 0 : index
    %c0_15 = arith.constant 0 : index
    %14 = vector.load %arg9[%c0_14, %c0_15] : memref<256x256xf32, #tpu.memory_space<vmem>>, vector<256x256xf32>
    %cst_16 = arith.constant dense<0.000000e+00> : vector<1x256xf32>
    %15 = tpu.matmul %10, %14, %cst_16 {dimension_numbers = #tpu.dot_dimension_numbers<[1], [0], [0], [1], [0, 0, 1, 1], [], []>} : vector<1x256xf32>, vector<256x256xf32>, vector<1x256xf32> -> vector<1x256xf32>
    %cst_17 = arith.constant 7.812500e-03 : f32
    %16 = vector.broadcast %cst_17 : f32 to vector<1x256xf32>
    %17 = arith.mulf %15, %16 : vector<1x256xf32>
    %cst_18 = arith.constant dense<0.000000e+00> : vector<1x256xf32>
    %18 = tpu.matmul %13, %14, %cst_18 {dimension_numbers = #tpu.dot_dimension_numbers<[1], [0], [0], [1], [0, 0, 1, 1], [], []>} : vector<1x256xf32>, vector<256x256xf32>, vector<1x256xf32> -> vector<1x256xf32>
    %cst_19 = arith.constant 7.812500e-03 : f32
    %19 = vector.broadcast %cst_19 : f32 to vector<1x256xf32>
    %20 = arith.mulf %18, %19 : vector<1x256xf32>
    %21 = arith.mulf %17, %17 : vector<1x256xf32>
    %22 = arith.subf %20, %21 : vector<1x256xf32>
    %cst_20 = arith.constant 0.000000e+00 : f32
    %23 = vector.broadcast %cst_20 : f32 to vector<1x256xf32>
    %24 = arith.maximumf %22, %23 : vector<1x256xf32>
    %cst_21 = arith.constant 9.99999974E-6 : f32
    %25 = vector.broadcast %cst_21 : f32 to vector<1x256xf32>
    %26 = arith.addf %24, %25 : vector<1x256xf32>
    %27 = math.rsqrt %26 : vector<1x256xf32>
    %28 = vector.broadcast %17 : vector<1x256xf32> to vector<16x256xf32>
    %29 = arith.subf %8, %28 : vector<16x256xf32>
    %c0_22 = arith.constant 0 : index
    %c0_23 = arith.constant 0 : index
    %30 = vector.load %arg16[%c0_22, %c0_23] : memref<1x256xf32, #tpu.memory_space<vmem>>, vector<1x256xf32>
    %31 = arith.mulf %27, %30 : vector<1x256xf32>
    %32 = vector.broadcast %31 : vector<1x256xf32> to vector<16x256xf32>
    %33 = arith.mulf %29, %32 : vector<16x256xf32>
    %c0_24 = arith.constant 0 : index
    %c0_25 = arith.constant 0 : index
    %34 = vector.load %arg17[%c0_24, %c0_25] : memref<1x256xf32, #tpu.memory_space<vmem>>, vector<1x256xf32>
    %35 = vector.broadcast %34 : vector<1x256xf32> to vector<16x256xf32>
    %36 = arith.addf %33, %35 : vector<16x256xf32>
    %cst_26 = arith.constant dense<0.000000e+00> : vector<128xf32>
    %37 = vector.multi_reduction <add>, %5, %cst_26 [0] : vector<16x128xf32> to vector<128xf32>
    %38 = vector.shape_cast %37 : vector<128xf32> to vector<1x128xf32>
    %39 = arith.mulf %5, %5 : vector<16x128xf32>
    %cst_27 = arith.constant dense<0.000000e+00> : vector<128xf32>
    %40 = vector.multi_reduction <add>, %39, %cst_27 [0] : vector<16x128xf32> to vector<128xf32>
    %41 = vector.shape_cast %40 : vector<128xf32> to vector<1x128xf32>
    %c0_28 = arith.constant 0 : index
    %c0_29 = arith.constant 0 : index
    %42 = vector.load %arg5[%c0_28, %c0_29] : memref<128x128xf32, #tpu.memory_space<vmem>>, vector<128x128xf32>
    %cst_30 = arith.constant dense<0.000000e+00> : vector<1x128xf32>
    %43 = tpu.matmul %38, %42, %cst_30 {dimension_numbers = #tpu.dot_dimension_numbers<[1], [0], [0], [1], [0, 0, 1, 1], [], []>} : vector<1x128xf32>, vector<128x128xf32>, vector<1x128xf32> -> vector<1x128xf32>
    %cst_31 = arith.constant 7.812500e-03 : f32
    %44 = vector.broadcast %cst_31 : f32 to vector<1x128xf32>
    %45 = arith.mulf %43, %44 : vector<1x128xf32>
    %cst_32 = arith.constant dense<0.000000e+00> : vector<1x128xf32>
    %46 = tpu.matmul %41, %42, %cst_32 {dimension_numbers = #tpu.dot_dimension_numbers<[1], [0], [0], [1], [0, 0, 1, 1], [], []>} : vector<1x128xf32>, vector<128x128xf32>, vector<1x128xf32> -> vector<1x128xf32>
    %cst_33 = arith.constant 7.812500e-03 : f32
    %47 = vector.broadcast %cst_33 : f32 to vector<1x128xf32>
    %48 = arith.mulf %46, %47 : vector<1x128xf32>
    %49 = arith.mulf %45, %45 : vector<1x128xf32>
    %50 = arith.subf %48, %49 : vector<1x128xf32>
    %cst_34 = arith.constant 0.000000e+00 : f32
    %51 = vector.broadcast %cst_34 : f32 to vector<1x128xf32>
    %52 = arith.maximumf %50, %51 : vector<1x128xf32>
    %cst_35 = arith.constant 9.99999974E-6 : f32
    %53 = vector.broadcast %cst_35 : f32 to vector<1x128xf32>
    %54 = arith.addf %52, %53 : vector<1x128xf32>
    %55 = math.rsqrt %54 : vector<1x128xf32>
    %56 = vector.broadcast %45 : vector<1x128xf32> to vector<16x128xf32>
    %57 = arith.subf %5, %56 : vector<16x128xf32>
    %c0_36 = arith.constant 0 : index
    %c0_37 = arith.constant 0 : index
    %58 = vector.load %arg3[%c0_36, %c0_37] : memref<1x128xf32, #tpu.memory_space<vmem>>, vector<1x128xf32>
    %59 = arith.mulf %55, %58 : vector<1x128xf32>
    %60 = vector.broadcast %59 : vector<1x128xf32> to vector<16x128xf32>
    %61 = arith.mulf %57, %60 : vector<16x128xf32>
    %c0_38 = arith.constant 0 : index
    %c0_39 = arith.constant 0 : index
    %62 = vector.load %arg4[%c0_38, %c0_39] : memref<1x128xf32, #tpu.memory_space<vmem>>, vector<1x128xf32>
    %63 = vector.broadcast %62 : vector<1x128xf32> to vector<16x128xf32>
    %64 = arith.addf %61, %63 : vector<16x128xf32>
    %cst_40 = arith.constant 0.000000e+00 : f32
    %65 = vector.broadcast %cst_40 : f32 to vector<16x128xf32>
    %66 = arith.cmpf ogt, %64, %65 : vector<16x128xf32>
    %67 = vector.broadcast %0 : f32 to vector<16x128xf32>
    %68 = arith.mulf %67, %64 : vector<16x128xf32>
    %69 = arith.select %66, %64, %68 : vector<16x128xi1>, vector<16x128xf32>
    %70 = arith.truncf %69 : vector<16x128xf32> to vector<16x128xbf16>
    %c0_41 = arith.constant 0 : index
    %c0_42 = arith.constant 0 : index
    %c0_43 = arith.constant 0 : index
    %71 = vector.load %arg6[%c0_41, %c0_42, %c0_43] : memref<3x128x256xbf16, #tpu.memory_space<vmem>>, vector<1x128x256xbf16>
    %72 = vector.shape_cast %71 : vector<1x128x256xbf16> to vector<128x256xbf16>
    %cst_44 = arith.constant dense<0.000000e+00> : vector<16x256xf32>
    %73 = tpu.matmul %70, %72, %cst_44 {dimension_numbers = #tpu.dot_dimension_numbers<[1], [0], [0], [1], [0, 0, 1, 1], [], []>} : vector<16x128xbf16>, vector<128x256xbf16>, vector<16x256xf32> -> vector<16x256xf32>
    %c1 = arith.constant 1 : index
    %c0_45 = arith.constant 0 : index
    %c0_46 = arith.constant 0 : index
    %74 = vector.load %arg6[%c1, %c0_45, %c0_46] : memref<3x128x256xbf16, #tpu.memory_space<vmem>>, vector<1x128x256xbf16>
    %75 = vector.shape_cast %74 : vector<1x128x256xbf16> to vector<128x256xbf16>
    %cst_47 = arith.constant dense<0.000000e+00> : vector<16x256xf32>
    %76 = tpu.matmul %70, %75, %cst_47 {dimension_numbers = #tpu.dot_dimension_numbers<[1], [0], [0], [1], [0, 0, 1, 1], [], []>} : vector<16x128xbf16>, vector<128x256xbf16>, vector<16x256xf32> -> vector<16x256xf32>
    %c2 = arith.constant 2 : index
    %c0_48 = arith.constant 0 : index
    %c0_49 = arith.constant 0 : index
    %77 = vector.load %arg6[%c2, %c0_48, %c0_49] : memref<3x128x256xbf16, #tpu.memory_space<vmem>>, vector<1x128x256xbf16>
    %78 = vector.shape_cast %77 : vector<1x128x256xbf16> to vector<128x256xbf16>
    %cst_50 = arith.constant dense<0.000000e+00> : vector<16x256xf32>
    %79 = tpu.matmul %70, %78, %cst_50 {dimension_numbers = #tpu.dot_dimension_numbers<[1], [0], [0], [1], [0, 0, 1, 1], [], []>} : vector<16x128xbf16>, vector<128x256xbf16>, vector<16x256xf32> -> vector<16x256xf32>
    %c1_i32 = arith.constant 1 : i32
    %80 = tpu.dynamic_rotate %73 by %c1_i32 dim 0 : vector<16x256xf32>, i32 -> vector<16x256xf32>
    %81 = vector.broadcast %2 : vector<16x1xf32> to vector<16x256xf32>
    %82 = arith.mulf %80, %81 : vector<16x256xf32>
    %c15_i32 = arith.constant 15 : i32
    %83 = tpu.dynamic_rotate %79 by %c15_i32 dim 0 : vector<16x256xf32>, i32 -> vector<16x256xf32>
    %84 = vector.broadcast %3 : vector<16x1xf32> to vector<16x256xf32>
    %85 = arith.mulf %83, %84 : vector<16x256xf32>
    %86 = arith.addf %76, %82 : vector<16x256xf32>
    %87 = arith.addf %86, %85 : vector<16x256xf32>
    %cst_51 = arith.constant dense<0.000000e+00> : vector<256xf32>
    %88 = vector.multi_reduction <add>, %87, %cst_51 [0] : vector<16x256xf32> to vector<256xf32>
    %89 = vector.shape_cast %88 : vector<256xf32> to vector<1x256xf32>
    %90 = arith.mulf %87, %87 : vector<16x256xf32>
    %cst_52 = arith.constant dense<0.000000e+00> : vector<256xf32>
    %91 = vector.multi_reduction <add>, %90, %cst_52 [0] : vector<16x256xf32> to vector<256xf32>
    %92 = vector.shape_cast %91 : vector<256xf32> to vector<1x256xf32>
    %c0_53 = arith.constant 0 : index
    %c0_54 = arith.constant 0 : index
    %93 = vector.load %arg9[%c0_53, %c0_54] : memref<256x256xf32, #tpu.memory_space<vmem>>, vector<256x256xf32>
    %cst_55 = arith.constant dense<0.000000e+00> : vector<1x256xf32>
    %94 = tpu.matmul %89, %93, %cst_55 {dimension_numbers = #tpu.dot_dimension_numbers<[1], [0], [0], [1], [0, 0, 1, 1], [], []>} : vector<1x256xf32>, vector<256x256xf32>, vector<1x256xf32> -> vector<1x256xf32>
    %cst_56 = arith.constant 7.812500e-03 : f32
    %95 = vector.broadcast %cst_56 : f32 to vector<1x256xf32>
    %96 = arith.mulf %94, %95 : vector<1x256xf32>
    %cst_57 = arith.constant dense<0.000000e+00> : vector<1x256xf32>
    %97 = tpu.matmul %92, %93, %cst_57 {dimension_numbers = #tpu.dot_dimension_numbers<[1], [0], [0], [1], [0, 0, 1, 1], [], []>} : vector<1x256xf32>, vector<256x256xf32>, vector<1x256xf32> -> vector<1x256xf32>
    %cst_58 = arith.constant 7.812500e-03 : f32
    %98 = vector.broadcast %cst_58 : f32 to vector<1x256xf32>
    %99 = arith.mulf %97, %98 : vector<1x256xf32>
    %100 = arith.mulf %96, %96 : vector<1x256xf32>
    %101 = arith.subf %99, %100 : vector<1x256xf32>
    %cst_59 = arith.constant 0.000000e+00 : f32
    %102 = vector.broadcast %cst_59 : f32 to vector<1x256xf32>
    %103 = arith.maximumf %101, %102 : vector<1x256xf32>
    %cst_60 = arith.constant 9.99999974E-6 : f32
    %104 = vector.broadcast %cst_60 : f32 to vector<1x256xf32>
    %105 = arith.addf %103, %104 : vector<1x256xf32>
    %106 = math.rsqrt %105 : vector<1x256xf32>
    %107 = vector.broadcast %96 : vector<1x256xf32> to vector<16x256xf32>
    %108 = arith.subf %87, %107 : vector<16x256xf32>
    %c0_61 = arith.constant 0 : index
    %c0_62 = arith.constant 0 : index
    %109 = vector.load %arg7[%c0_61, %c0_62] : memref<1x256xf32, #tpu.memory_space<vmem>>, vector<1x256xf32>
    %110 = arith.mulf %106, %109 : vector<1x256xf32>
    %111 = vector.broadcast %110 : vector<1x256xf32> to vector<16x256xf32>
    %112 = arith.mulf %108, %111 : vector<16x256xf32>
    %c0_63 = arith.constant 0 : index
    %c0_64 = arith.constant 0 : index
    %113 = vector.load %arg8[%c0_63, %c0_64] : memref<1x256xf32, #tpu.memory_space<vmem>>, vector<1x256xf32>
    %114 = vector.broadcast %113 : vector<1x256xf32> to vector<16x256xf32>
    %115 = arith.addf %112, %114 : vector<16x256xf32>
    %cst_65 = arith.constant 0.000000e+00 : f32
    %116 = vector.broadcast %cst_65 : f32 to vector<16x256xf32>
    %117 = arith.cmpf ogt, %115, %116 : vector<16x256xf32>
    %118 = vector.broadcast %0 : f32 to vector<16x256xf32>
    %119 = arith.mulf %118, %115 : vector<16x256xf32>
    %120 = arith.select %117, %115, %119 : vector<16x256xi1>, vector<16x256xf32>
    %121 = arith.truncf %120 : vector<16x256xf32> to vector<16x256xbf16>
    %c0_66 = arith.constant 0 : index
    %c0_67 = arith.constant 0 : index
    %c0_68 = arith.constant 0 : index
    %122 = vector.load %arg10[%c0_66, %c0_67, %c0_68] : memref<3x256x256xbf16, #tpu.memory_space<vmem>>, vector<1x256x256xbf16>
    %123 = vector.shape_cast %122 : vector<1x256x256xbf16> to vector<256x256xbf16>
    %cst_69 = arith.constant dense<0.000000e+00> : vector<16x256xf32>
    %124 = tpu.matmul %121, %123, %cst_69 {dimension_numbers = #tpu.dot_dimension_numbers<[1], [0], [0], [1], [0, 0, 1, 1], [], []>} : vector<16x256xbf16>, vector<256x256xbf16>, vector<16x256xf32> -> vector<16x256xf32>
    %c1_70 = arith.constant 1 : index
    %c0_71 = arith.constant 0 : index
    %c0_72 = arith.constant 0 : index
    %125 = vector.load %arg10[%c1_70, %c0_71, %c0_72] : memref<3x256x256xbf16, #tpu.memory_space<vmem>>, vector<1x256x256xbf16>
    %126 = vector.shape_cast %125 : vector<1x256x256xbf16> to vector<256x256xbf16>
    %cst_73 = arith.constant dense<0.000000e+00> : vector<16x256xf32>
    %127 = tpu.matmul %121, %126, %cst_73 {dimension_numbers = #tpu.dot_dimension_numbers<[1], [0], [0], [1], [0, 0, 1, 1], [], []>} : vector<16x256xbf16>, vector<256x256xbf16>, vector<16x256xf32> -> vector<16x256xf32>
    %c2_74 = arith.constant 2 : index
    %c0_75 = arith.constant 0 : index
    %c0_76 = arith.constant 0 : index
    %128 = vector.load %arg10[%c2_74, %c0_75, %c0_76] : memref<3x256x256xbf16, #tpu.memory_space<vmem>>, vector<1x256x256xbf16>
    %129 = vector.shape_cast %128 : vector<1x256x256xbf16> to vector<256x256xbf16>
    %cst_77 = arith.constant dense<0.000000e+00> : vector<16x256xf32>
    %130 = tpu.matmul %121, %129, %cst_77 {dimension_numbers = #tpu.dot_dimension_numbers<[1], [0], [0], [1], [0, 0, 1, 1], [], []>} : vector<16x256xbf16>, vector<256x256xbf16>, vector<16x256xf32> -> vector<16x256xf32>
    %c1_i32_78 = arith.constant 1 : i32
    %131 = tpu.dynamic_rotate %124 by %c1_i32_78 dim 0 : vector<16x256xf32>, i32 -> vector<16x256xf32>
    %132 = vector.broadcast %2 : vector<16x1xf32> to vector<16x256xf32>
    %133 = arith.mulf %131, %132 : vector<16x256xf32>
    %c15_i32_79 = arith.constant 15 : i32
    %134 = tpu.dynamic_rotate %130 by %c15_i32_79 dim 0 : vector<16x256xf32>, i32 -> vector<16x256xf32>
    %135 = vector.broadcast %3 : vector<16x1xf32> to vector<16x256xf32>
    %136 = arith.mulf %134, %135 : vector<16x256xf32>
    %137 = arith.addf %127, %133 : vector<16x256xf32>
    %138 = arith.addf %137, %136 : vector<16x256xf32>
    %139 = vector.shape_cast %138 : vector<16x256xf32> to vector<2x8x256xf32>
    %cst_80 = arith.constant dense<0.000000e+00> : vector<2x256xf32>
    %140 = vector.multi_reduction <add>, %139, %cst_80 [1] : vector<2x8x256xf32> to vector<2x256xf32>
    %c0_81 = arith.constant 0 : index
    %c0_82 = arith.constant 0 : index
    %141 = vector.load %arg11[%c0_81, %c0_82] : memref<256x2xf32, #tpu.memory_space<vmem>>, vector<256x2xf32>
    %cst_83 = arith.constant dense<0.000000e+00> : vector<2x2xf32>
    %142 = tpu.matmul %140, %141, %cst_83 {dimension_numbers = #tpu.dot_dimension_numbers<[1], [0], [0], [1], [0, 0, 1, 1], [], []>} : vector<2x256xf32>, vector<256x2xf32>, vector<2x2xf32> -> vector<2x2xf32>
    %cst_84 = arith.constant 1.562500e-02 : f32
    %143 = vector.broadcast %cst_84 : f32 to vector<2x2xf32>
    %144 = arith.mulf %142, %143 : vector<2x2xf32>
    %c0_85 = arith.constant 0 : index
    %c0_86 = arith.constant 0 : index
    %145 = vector.load %arg12[%c0_85, %c0_86] : memref<1x2xf32, #tpu.memory_space<vmem>>, vector<1x2xf32>
    %146 = vector.broadcast %145 : vector<1x2xf32> to vector<2x2xf32>
    %147 = arith.addf %144, %146 : vector<2x2xf32>
    %cst_87 = arith.constant 0.000000e+00 : f32
    %148 = vector.broadcast %cst_87 : f32 to vector<2x2xf32>
    %149 = arith.cmpf ogt, %147, %148 : vector<2x2xf32>
    %150 = vector.broadcast %1 : f32 to vector<2x2xf32>
    %151 = arith.mulf %150, %147 : vector<2x2xf32>
    %152 = arith.select %149, %147, %151 : vector<2x2xi1>, vector<2x2xf32>
    %c0_88 = arith.constant 0 : index
    %c0_89 = arith.constant 0 : index
    %153 = vector.load %arg13[%c0_88, %c0_89] : memref<2x256xf32, #tpu.memory_space<vmem>>, vector<2x256xf32>
    %cst_90 = arith.constant dense<0.000000e+00> : vector<2x256xf32>
    %154 = tpu.matmul %152, %153, %cst_90 {dimension_numbers = #tpu.dot_dimension_numbers<[1], [0], [0], [1], [0, 0, 1, 1], [], []>} : vector<2x2xf32>, vector<2x256xf32>, vector<2x256xf32> -> vector<2x256xf32>
    %c0_91 = arith.constant 0 : index
    %c0_92 = arith.constant 0 : index
    %155 = vector.load %arg14[%c0_91, %c0_92] : memref<1x256xf32, #tpu.memory_space<vmem>>, vector<1x256xf32>
    %156 = vector.broadcast %155 : vector<1x256xf32> to vector<2x256xf32>
    %157 = arith.addf %154, %156 : vector<2x256xf32>
    %158 = arith.negf %157 : vector<2x256xf32>
    %159 = math.exp %158 : vector<2x256xf32>
    %cst_93 = arith.constant 1.000000e+00 : f32
    %160 = vector.broadcast %cst_93 : f32 to vector<2x256xf32>
    %161 = arith.addf %160, %159 : vector<2x256xf32>
    %162 = arith.divf %160, %161 : vector<2x256xf32>
    %163 = vector.shape_cast %162 : vector<2x256xf32> to vector<2x1x256xf32>
    %164 = vector.broadcast %163 : vector<2x1x256xf32> to vector<2x8x256xf32>
    %165 = arith.mulf %139, %164 : vector<2x8x256xf32>
    %166 = vector.shape_cast %36 : vector<16x256xf32> to vector<2x8x256xf32>
    %167 = arith.addf %165, %166 : vector<2x8x256xf32>
    %c0_94 = arith.constant 0 : index
    %c0_95 = arith.constant 0 : index
    %c0_96 = arith.constant 0 : index
    %168 = vector.load %arg20[%c0_94, %c0_95, %c0_96] : memref<2x8x256xf32, #tpu.memory_space<vmem>>, vector<2x8x256xf32>
    tpu.vector_store %arg20[%c0_94, %c0_95, %c0_96], %167 {strides = array<i32>} : memref<2x8x256xf32, #tpu.memory_space<vmem>>, vector<2x8x256xf32>,
    return
  }
}

</mosaic_0001>

<llo_original>
// kernel: residual_block_forward_lane.1
$region0: #{residual_block_forward_lane.1}
  #allocation0 [shape = 'u32[]', space=smem, size = 0x4, offset = 0x4, fixed_abs, tag = 'smem constant byte address 0x4 - core index']
  #allocation1 [shape = 'u32[144,128]{1,0:T(1,128)}', space=vmem, size = 0x12000, scoped, tag = 'internal scratch']
  #allocation2 [shape = 'f32[1,1]{1,0:T(1,128)S(6)}', space=smem, size = 0x200, scoped, tag = 'scoped memory for residual_block_forward_lane.1']
  #allocation3 [shape = 'f32[1,1]{1,0:T(1,128)S(6)}', space=smem, size = 0x200, scoped, tag = 'scoped memory for residual_block_forward_lane.1']
  %s0 = inlined_call_operand.vmem [shape: f32[2,8,128], index: 0, kind: input, shape index: {}]
  %s1 = inlined_call_operand.vmem [shape: f32[16,1], index: 1, kind: input, shape index: {}]
  %s2 = inlined_call_operand.vmem [shape: f32[16,1], index: 2, kind: input, shape index: {}]
  %s3 = inlined_call_operand.vmem [shape: f32[1,128], index: 3, kind: input, shape index: {}]
  %s4 = inlined_call_operand.vmem [shape: f32[1,128], index: 4, kind: input, shape index: {}]
  %s5 = inlined_call_operand.vmem [shape: f32[128,128], index: 5, kind: input, shape index: {}]
  %s6 = inlined_call_operand.hbm [shape: bf16[3,128,256], index: 6, kind: input, shape index: {}]
  %s7 = inlined_call_operand.vmem [shape: f32[1,256], index: 7, kind: input, shape index: {}]
  %s8 = inlined_call_operand.vmem [shape: f32[1,256], index: 8, kind: input, shape index: {}]
  %s9 = inlined_call_operand.hbm [shape: f32[256,256], index: 9, kind: input, shape index: {}]
  %s10 = inlined_call_operand.hbm [shape: bf16[3,256,256], index: 10, kind: input, shape index: {}]
  %s11 = inlined_call_operand.vmem [shape: f32[256,2], index: 11, kind: input, shape index: {}]
  %s12 = inlined_call_operand.vmem [shape: f32[1,2], index: 12, kind: input, shape index: {}]
  %s13 = inlined_call_operand.vmem [shape: f32[2,256], index: 13, kind: input, shape index: {}]
  %s14 = inlined_call_operand.vmem [shape: f32[1,256], index: 14, kind: input, shape index: {}]
  %s15 = inlined_call_operand.vmem [shape: bf16[128,256], index: 15, kind: input, shape index: {}]
  %s16 = inlined_call_operand.vmem [shape: f32[1,256], index: 16, kind: input, shape index: {}]
  %s17 = inlined_call_operand.vmem [shape: f32[1,256], index: 17, kind: input, shape index: {}]
  %s18 = inlined_call_operand.<no memory space> [shape: f32[1,1], index: 18, kind: input, shape index: {}]
  %s19 = inlined_call_operand.<no memory space> [shape: f32[1,1], index: 19, kind: input, shape index: {}]
  %s20 = inlined_call_operand.hbm [shape: f32[2,8,256], index: 20, kind: output, shape index: {}]
  %s21 = sld [smem:[#allocation0]]
  $region102: #{residual_block_forward_lane.1} parent=0
    _
  %s23 = ssub.s32 1, %s21
  %s24 = scalar_select 0, %s23, %s21
  %25 = sst [smem:[#allocation2]] %s18
  %26 = sst [smem:[#allocation3]] %s19
  $region1: #{residual_block_forward_lane.1} parent=0
    #allocation4 [shape = 'u8[196608]{0}', space=vmem, size = 0x30000, scoped, tag = 'input window, operand 6, single buffered']
    #allocation5 [shape = 's32[1]{0}', space=sflag, size = 0x4, scoped, tag = 'scoped memory for residual_block_forward_lane.1']
    #allocation6 [shape = 's32[1]{0}', space=sflag, size = 0x4, scoped, tag = 'scoped memory for residual_block_forward_lane.1']
    #allocation7 [shape = 'u8[262144]{0}', space=vmem, size = 0x40000, scoped, tag = 'input window, operand 9, single buffered']
    #allocation8 [shape = 's32[1]{0}', space=sflag, size = 0x4, scoped, tag = 'scoped memory for residual_block_forward_lane.1']
    #allocation9 [shape = 'u8[393216]{0}', space=vmem, size = 0x60000, scoped, tag = 'input window, operand 10, single buffered']
    #allocation10 [shape = 'u8[16384]{0}', space=vmem, size = 0x4000, scoped, tag = 'output window, operand 0, single buffered']
    %27 = vsyncpa [#allocation5], 0
    %28 = vsyncpa [#allocation8], 0
    %29 = vsyncpa [#allocation6], 0
    // Predicated region
    $region2: #{residual_block_forward_lane.1} parent=1 // pred_check
      _
    $region3: #{residual_block_forward_lane.1} parent=1 // pred_check_branch
      %31 = sbr.rel (0) target = $region5
    $region4: #{residual_block_forward_lane.1} parent=1 // pred_region
      _
    $region5: #{residual_block_forward_lane.1} parent=1 // pred_fallthru
      _
    // Predicated region
    $region6: #{residual_block_forward_lane.1} parent=1 // pred_check
      _
    $region7: #{residual_block_forward_lane.1} parent=1 // pred_check_branch
      %33 = sbr.rel (0) target = $region9
    $region8: #{residual_block_forward_lane.1} parent=1 // pred_region
      _
    $region9: #{residual_block_forward_lane.1} parent=1 // pred_fallthru
      _
    // Predicated region
    $region10: #{residual_block_forward_lane.1} parent=1 // pred_check
      _
    $region11: #{residual_block_forward_lane.1} parent=1 // pred_check_branch
      %35 = sbr.rel (0) target = $region13
    $region12: #{residual_block_forward_lane.1} parent=1 // pred_region
      _
    $region13: #{residual_block_forward_lane.1} parent=1 // pred_fallthru
      _
    // Predicated region
    $region14: #{residual_block_forward_lane.1} parent=1 // pred_check
      _
    $region15: #{residual_block_forward_lane.1} parent=1 // pred_check_branch
      %37 = sbr.rel (0) target = $region17
    $region16: #{residual_block_forward_lane.1} parent=1 // pred_region
      _
    $region17: #{residual_block_forward_lane.1} parent=1 // pred_fallthru
      _
    // Predicated region
    $region18: #{residual_block_forward_lane.1} parent=1 // pred_check
      _
    $region19: #{residual_block_forward_lane.1} parent=1 // pred_check_branch
      %39 = sbr.rel (0) target = $region21
    $region20: #{residual_block_forward_lane.1} parent=1 // pred_region
      _
    $region21: #{residual_block_forward_lane.1} parent=1 // pred_fallthru
      _
    // Predicated region
    $region22: #{residual_block_forward_lane.1} parent=1 // pred_check
      _
    $region23: #{residual_block_forward_lane.1} parent=1 // pred_check_branch
      %41 = sbr.rel (0) target = $region25
    $region24: #{residual_block_forward_lane.1} parent=1 // pred_region
      _
    $region25: #{residual_block_forward_lane.1} parent=1 // pred_fallthru
      _
    // Predicated region
    $region26: #{residual_block_forward_lane.1} parent=1 // pred_check
      _
    $region27: #{residual_block_forward_lane.1} parent=1 // pred_check_branch
      %43 = sbr.rel (0) target = $region29
    $region28: #{residual_block_forward_lane.1} parent=1 // pred_region
      %s45 = ssub.s32 6144, 6144
      %46 = vsyncadd [#allocation5], %s45
      %s47 = sshll.u32 [#allocation4], 4
      %s48 = int_to_ptr.vmem [resolvable:$true] %s47
      %53 = dma.hbm_to_vmem [thread:$0]  %s6, 6144, %s48, [#allocation5], 128, 128, 8
    $region29: #{residual_block_forward_lane.1} parent=1 // pred_fallthru
      _
    // Predicated region
    $region30: #{residual_block_forward_lane.1} parent=1 // pred_check
      _
    $region31: #{residual_block_forward_lane.1} parent=1 // pred_check_branch
      %55 = sbr.rel (0) target = $region33
    $region32: #{residual_block_forward_lane.1} parent=1 // pred_region
      _
    $region33: #{residual_block_forward_lane.1} parent=1 // pred_fallthru
      _
    // Predicated region
    $region34: #{residual_block_forward_lane.1} parent=1 // pred_check
      _
    $region35: #{residual_block_forward_lane.1} parent=1 // pred_check_branch
      %57 = sbr.rel (0) target = $region37
    $region36: #{residual_block_forward_lane.1} parent=1 // pred_region
      _
    $region37: #{residual_block_forward_lane.1} parent=1 // pred_fallthru
      _
    // Predicated region
    $region38: #{residual_block_forward_lane.1} parent=1 // pred_check
      _
    $region39: #{residual_block_forward_lane.1} parent=1 // pred_check_branch
      %59 = sbr.rel (0) target = $region41
    $region40: #{residual_block_forward_lane.1} parent=1 // pred_region
      %s61 = ssub.s32 8192, 8192
      %62 = vsyncadd [#allocation8], %s61
      %s63 = sshll.u32 [#allocation7], 4
      %s64 = int_to_ptr.vmem [resolvable:$true] %s63
      %69 = dma.hbm_to_vmem [thread:$0]  %s9, 8192, %s64, [#allocation8], 256, 256, 16
    $region41: #{residual_block_forward_lane.1} parent=1 // pred_fallthru
      _
    // Predicated region
    $region42: #{residual_block_forward_lane.1} parent=1 // pred_check
      _
    $region43: #{residual_block_forward_lane.1} parent=1 // pred_check_branch
      %71 = sbr.rel (0) target = $region45
    $region44: #{residual_block_forward_lane.1} parent=1 // pred_region
      %s73 = ssub.s32 12288, 12288
      %74 = vsyncadd [#allocation8], %s73
      %s75 = sshll.u32 [#allocation9], 4
      %s76 = int_to_ptr.vmem [resolvable:$true] %s75
      %81 = dma.hbm_to_vmem [thread:$0]  %s10, 12288, %s76, [#allocation8], 128, 128, 8
    $region45: #{residual_block_forward_lane.1} parent=1 // pred_fallthru
      _
    // Predicated region
    $region46: #{residual_block_forward_lane.1} parent=1 // pred_check
      _
    $region47: #{residual_block_forward_lane.1} parent=1 // pred_check_branch
      %83 = sbr.rel (0) target = $region49
    $region48: #{residual_block_forward_lane.1} parent=1 // pred_region
      _
    $region49: #{residual_block_forward_lane.1} parent=1 // pred_fallthru
      _
    // Predicated region
    $region50: #{residual_block_forward_lane.1} parent=1 // pred_check
      _
    $region51: #{residual_block_forward_lane.1} parent=1 // pred_check_branch
      %85 = sbr.rel (0) target = $region53
    $region52: #{residual_block_forward_lane.1} parent=1 // pred_region
      _
    $region53: #{residual_block_forward_lane.1} parent=1 // pred_fallthru
      _
    // Predicated region
    $region54: #{residual_block_forward_lane.1} parent=1 // pred_check
      _
    $region55: #{residual_block_forward_lane.1} parent=1 // pred_check_branch
      %87 = sbr.rel (0) target = $region57
    $region56: #{residual_block_forward_lane.1} parent=1 // pred_region
      _
    $region57: #{residual_block_forward_lane.1} parent=1 // pred_fallthru
      _
    // Predicated region
    $region58: #{residual_block_forward_lane.1} parent=1 // pred_check
      _
    $region59: #{residual_block_forward_lane.1} parent=1 // pred_check_branch
      %89 = sbr.rel (0) target = $region61
    $region60: #{residual_block_forward_lane.1} parent=1 // pred_region
      _
    $region61: #{residual_block_forward_lane.1} parent=1 // pred_fallthru
      _
    // Predicated region
    $region62: #{residual_block_forward_lane.1} parent=1 // pred_check
      _
    $region63: #{residual_block_forward_lane.1} parent=1 // pred_check_branch
      %91 = sbr.rel (0) target = $region65
    $region64: #{residual_block_forward_lane.1} parent=1 // pred_region
      _
    $region65: #{residual_block_forward_lane.1} parent=1 // pred_fallthru
      _
    // Predicated region
    $region66: #{residual_block_forward_lane.1} parent=1 // pred_check
      _
    $region67: #{residual_block_forward_lane.1} parent=1 // pred_check_branch
      %93 = sbr.rel (0) target = $region69
    $region68: #{residual_block_forward_lane.1} parent=1 // pred_region
      _
    $region69: #{residual_block_forward_lane.1} parent=1 // pred_fallthru
      _
    // Predicated region
    $region70: #{residual_block_forward_lane.1} parent=1 // pred_check
      _
    $region71: #{residual_block_forward_lane.1} parent=1 // pred_check_branch
      %95 = sbr.rel (0) target = $region73
    $region72: #{residual_block_forward_lane.1} parent=1 // pred_region
      _
    $region73: #{residual_block_forward_lane.1} parent=1 // pred_fallthru
      _
    // Predicated region
    $region74: #{residual_block_forward_lane.1} parent=1 // pred_check
      _
    $region75: #{residual_block_forward_lane.1} parent=1 // pred_check_branch
      %97 = sbr.rel (0) target = $region77
    $region76: #{residual_block_forward_lane.1} parent=1 // pred_region
      _
    $region77: #{residual_block_forward_lane.1} parent=1 // pred_fallthru
      _
    // Predicated region
    $region78: #{residual_block_forward_lane.1} parent=1 // pred_check
      _
    $region79: #{residual_block_forward_lane.1} parent=1 // pred_check_branch
      %99 = sbr.rel (0) target = $region81
    $region80: #{residual_block_forward_lane.1} parent=1 // pred_region
      _
    $region81: #{residual_block_forward_lane.1} parent=1 // pred_fallthru
      _
    // Predicated region
    $region82: #{residual_block_forward_lane.1} parent=1 // pred_check
      _
    $region83: #{residual_block_forward_lane.1} parent=1 // pred_check_branch
      %101 = sbr.rel (0) target = $region85
    $region84: #{residual_block_forward_lane.1} parent=1 // pred_region
      %102 = dma.done [#allocation5], 6144
    $region85: #{residual_block_forward_lane.1} parent=1 // pred_fallthru
      _
    // Predicated region
    $region86: #{residual_block_forward_lane.1} parent=1 // pred_check
      _
    $region87: #{residual_block_forward_lane.1} parent=1 // pred_check_branch
      %104 = sbr.rel (0) target = $region89
    $region88: #{residual_block_forward_lane.1} parent=1 // pred_region
      %105 = dma.done [#allocation8], 8192
    $region89: #{residual_block_forward_lane.1} parent=1 // pred_fallthru
      _
    // Predicated region
    $region90: #{residual_block_forward_lane.1} parent=1 // pred_check
      _
    $region91: #{residual_block_forward_lane.1} parent=1 // pred_check_branch
      %107 = sbr.rel (0) target = $region93
    $region92: #{residual_block_forward_lane.1} parent=1 // pred_region
      %108 = dma.done [#allocation8], 12288
    $region93: #{residual_block_forward_lane.1} parent=1 // pred_fallthru
      _
    %s110 = sld [smem:[#allocation2]]
    %s111 = sld [smem:[#allocation3]]
    %v112 = vld [vmem:[%s1] sm:$0xff]
    %v113 = vld [vmem:[%s1 + $0x8] sm:$0xff]
    %v114 = vld [vmem:[%s2] sm:$0xff]
    %v115 = vld [vmem:[%s2 + $0x8] sm:$0xff]
    %v116 = vld [vmem:[%s0] sm:$0xff]
    %v117 = vld [vmem:[%s0 + $0x8] sm:$0xff]
    %v118 = vpack.c.bf16 %v117, %v116
    %v119 = vld [vmem:[%s15] sm:$0xff]
    %v120 = vld [vmem:[%s15 + $0x8] sm:$0xff]
    %v121 = vld [vmem:[%s15 + $0x10] sm:$0xff]
    %v122 = vld [vmem:[%s15 + $0x18] sm:$0xff]
    %v123 = vld [vmem:[%s15 + $0x20] sm:$0xff]
    %v124 = vld [vmem:[%s15 + $0x28] sm:$0xff]
    %v125 = vld [vmem:[%s15 + $0x30] sm:$0xff]
    %v126 = vld [vmem:[%s15 + $0x38] sm:$0xff]
    %v127 = vld [vmem:[%s15 + $0x40] sm:$0xff]
    %v128 = vld [vmem:[%s15 + $0x48] sm:$0xff]
    %v129 = vld [vmem:[%s15 + $0x50] sm:$0xff]
    %v130 = vld [vmem:[%s15 + $0x58] sm:$0xff]
    %v131 = vld [vmem:[%s15 + $0x60] sm:$0xff]
    %v132 = vld [vmem:[%s15 + $0x68] sm:$0xff]
    %v133 = vld [vmem:[%s15 + $0x70] sm:$0xff]
    %v134 = vld [vmem:[%s15 + $0x78] sm:$0xff]
    %v151 = vunpack.c.l.b16 %v119
    %v152 = vunpack.c.h.b16 %v119
    %v153 = vunpack.c.l.b16 %v120
    %v154 = vunpack.c.h.b16 %v120
    %v155 = vunpack.c.l.b16 %v121
    %v156 = vunpack.c.h.b16 %v121
    %v157 = vunpack.c.l.b16 %v122
    %v158 = vunpack.c.h.b16 %v122
    %v159 = vunpack.c.l.b16 %v123
    %v160 = vunpack.c.h.b16 %v123
    %v161 = vunpack.c.l.b16 %v124
    %v162 = vunpack.c.h.b16 %v124
    %v163 = vunpack.c.l.b16 %v125
    %v164 = vunpack.c.h.b16 %v125
    %v165 = vunpack.c.l.b16 %v126
    %v166 = vunpack.c.h.b16 %v126
    %v167 = vunpack.c.l.b16 %v127
    %v168 = vunpack.c.h.b16 %v127
    %v169 = vunpack.c.l.b16 %v128
    %v170 = vunpack.c.h.b16 %v128
    %v171 = vunpack.c.l.b16 %v129
    %v172 = vunpack.c.h.b16 %v129
    %v173 = vunpack.c.l.b16 %v130
    %v174 = vunpack.c.h.b16 %v130
    %v175 = vunpack.c.l.b16 %v131
    %v176 = vunpack.c.h.b16 %v131
    %v177 = vunpack.c.l.b16 %v132
    %v178 = vunpack.c.h.b16 %v132
    %v179 = vunpack.c.l.b16 %v133
    %v180 = vunpack.c.h.b16 %v133
    %v181 = vunpack.c.l.b16 %v134
    %v182 = vunpack.c.h.b16 %v134
    %v183 = vpack.c.b16 %v153, %v151
    %v184 = vpack.c.b16 %v154, %v152
    %v185 = vpack.c.b16 %v157, %v155
    %v186 = vpack.c.b16 %v158, %v156
    %v187 = vpack.c.b16 %v161, %v159
    %v188 = vpack.c.b16 %v162, %v160
    %v189 = vpack.c.b16 %v165, %v163
    %v190 = vpack.c.b16 %v166, %v164
    %v191 = vpack.c.b16 %v169, %v167
    %v192 = vpack.c.b16 %v170, %v168
    %v193 = vpack.c.b16 %v173, %v171
    %v194 = vpack.c.b16 %v174, %v172
    %v195 = vpack.c.b16 %v177, %v175
    %v196 = vpack.c.b16 %v178, %v176
    %v197 = vpack.c.b16 %v181, %v179
    %v198 = vpack.c.b16 %v182, %v180
    %215 = vmatprep.subr.bf16.mxu0 %v184
    %216 = vmatpush1.bf16.msra.mxu0 %v183
    %217 = vmatprep.subr.bf16.mxu0 %v186
    %218 = vmatpush1.bf16.msra.mxu0 %v185
    %219 = vmatprep.subr.bf16.mxu0 %v188
    %220 = vmatpush1.bf16.msra.mxu0 %v187
    %221 = vmatprep.subr.bf16.mxu0 %v190
    %222 = vmatpush1.bf16.msra.mxu0 %v189
    %223 = vmatprep.subr.bf16.mxu0 %v192
    %224 = vmatpush1.bf16.msra.mxu0 %v191
    %225 = vmatprep.subr.bf16.mxu0 %v194
    %226 = vmatpush1.bf16.msra.mxu0 %v193
    %227 = vmatprep.subr.bf16.mxu0 %v196
    %228 = vmatpush1.bf16.msra.mxu0 %v195
    %229 = vmatprep.subr.bf16.mxu0 %v198
    %230 = vmatpush1.bf16.msra.mxu0 %v197
    %231 = vmatprep.subr.bf16.mxu0 0
    %232 = vmatpush1.bf16.msra.mxu0 0
    %233 = vmatprep.subr.bf16.mxu0 0
    %234 = vmatpush1.bf16.msra.mxu0 0
    %235 = vmatprep.subr.bf16.mxu0 0
    %236 = vmatpush1.bf16.msra.mxu0 0
    %237 = vmatprep.subr.bf16.mxu0 0
    %238 = vmatpush1.bf16.msra.mxu0 0
    %239 = vmatprep.subr.bf16.mxu0 0
    %240 = vmatpush1.bf16.msra.mxu0 0
    %241 = vmatprep.subr.bf16.mxu0 0
    %242 = vmatpush1.bf16.msra.mxu0 0
    %243 = vmatprep.subr.bf16.mxu0 0
    %244 = vmatpush1.bf16.msra.mxu0 0
    %245 = vmatprep.subr.bf16.mxu0 0
    %246 = vmatpush1.bf16.msra.mxu0 0
    %247 = vmatprep.mubr.bf16.mxu0 0
    %248 = vmatmul.mubr.bf16.gmra.mrb[0].mxu0 %v118
    %v249 = vpop.f32.mrb[0].mxu0
    %v250 = vadd.f32 0.0, %v249
    %v251 = vpop.f32.mrb[0].mxu0
    %v252 = vadd.f32 0.0, %v251
    %v253 = vpop.f32.mrb[0].mxu0
    %v254 = vadd.f32 0.0, %v253
    %v255 = vpop.f32.mrb[0].mxu0
    %v256 = vadd.f32 0.0, %v255
    %257 = vdwg.mxu0
    %v258 = vadd.f32 %v250, %v254
    %v259 = vrot.slane %v258, 4
    %v260 = vadd.f32 %v258, %v259
    %v261 = vrot.slane %v260, 2
    %v262 = vadd.f32 %v260, %v261
    %v263 = vrot.slane %v262, 1
    %v264 = vadd.f32 %v262, %v263
    %v265 = vadd.f32 %v252, %v256
    %v266 = vrot.slane %v265, 4
    %v267 = vadd.f32 %v265, %v266
    %v268 = vrot.slane %v267, 2
    %v269 = vadd.f32 %v267, %v268
    %v270 = vrot.slane %v269, 1
    %v271 = vadd.f32 %v269, %v270
    %v272 = vmul.f32 %v250, %v250
    %v273 = vmul.f32 %v252, %v252
    %v274 = vmul.f32 %v254, %v254
    %v275 = vmul.f32 %v256, %v256
    %v276 = vadd.f32 %v272, %v274
    %v277 = vrot.slane %v276, 4
    %v278 = vadd.f32 %v276, %v277
    %v279 = vrot.slane %v278, 2
    %v280 = vadd.f32 %v278, %v279
    %v281 = vrot.slane %v280, 1
    %v282 = vadd.f32 %v280, %v281
    %v283 = vadd.f32 %v273, %v275
    %v284 = vrot.slane %v283, 4
    %v285 = vadd.f32 %v283, %v284
    %v286 = vrot.slane %v285, 2
    %v287 = vadd.f32 %v285, %v286
    %v288 = vrot.slane %v287, 1
    %v289 = vadd.f32 %v287, %v288
    %v290 = vld [vmem:[#allocation7] sm:$0xff]
    %v291 = vld [vmem:[#allocation7 + $0x8] sm:$0xff]
    %v292 = vld [vmem:[#allocation7 + $0x10] sm:$0xff]
    %v293 = vld [vmem:[#allocation7 + $0x18] sm:$0xff]
    %v294 = vld [vmem:[#allocation7 + $0x20] sm:$0xff]
    %v295 = vld [vmem:[#allocation7 + $0x28] sm:$0xff]
    %v296 = vld [vmem:[#allocation7 + $0x30] sm:$0xff]
    %v297 = vld [vmem:[#allocation7 + $0x38] sm:$0xff]
    %v298 = vld [vmem:[#allocation7 + $0x40] sm:$0xff]
    %v299 = vld [vmem:[#allocation7 + $0x48] sm:$0xff]
    %v300 = vld [vmem:[#allocation7 + $0x50] sm:$0xff]
    %v301 = vld [vmem:[#allocation7 + $0x58] sm:$0xff]
    %v302 = vld [vmem:[#allocation7 + $0x60] sm:$0xff]
    %v303 = vld [vmem:[#allocation7 + $0x68] sm:$0xff]
    %v304 = vld [vmem:[#allocation7 + $0x70] sm:$0xff]
    %v305 = vld [vmem:[#allocation7 + $0x78] sm:$0xff]
    %v306 = vld [vmem:[#allocation7 + $0x80] sm:$0xff]
    %v307 = vld [vmem:[#allocation7 + $0x88] sm:$0xff]
    %v308 = vld [vmem:[#allocation7 + $0x90] sm:$0xff]
    %v309 = vld [vmem:[#allocation7 + $0x98] sm:$0xff]
    %v310 = vld [vmem:[#allocation7 + $0xa0] sm:$0xff]
    %v311 = vld [vmem:[#allocation7 + $0xa8] sm:$0xff]
    %v312 = vld [vmem:[#allocation7 + $0xb0] sm:$0xff]
    %v313 = vld [vmem:[#allocation7 + $0xb8] sm:$0xff]
    %v314 = vld [vmem:[#allocation7 + $0xc0] sm:$0xff]
    %v315 = vld [vmem:[#allocation7 + $0xc8] sm:$0xff]
    %v316 = vld [vmem:[#allocation7 + $0xd0] sm:$0xff]
    %v317 = vld [vmem:[#allocation7 + $0xd8] sm:$0xff]
    %v318 = vld [vmem:[#allocation7 + $0xe0] sm:$0xff]
    %v319 = vld [vmem:[#allocation7 + $0xe8] sm:$0xff]
    %v320 = vld [vmem:[#allocation7 + $0xf0] sm:$0xff]
    %v321 = vld [vmem:[#allocation7 + $0xf8] sm:$0xff]
    %v322 = vld [vmem:[#allocation7 + $0x100] sm:$0xff]
    %v323 = vld [vmem:[#allocation7 + $0x108] sm:$0xff]
    %v324 = vld [vmem:[#allocation7 + $0x110] sm:$0xff]
    %v325 = vld [vmem:[#allocation7 + $0x118] sm:$0xff]
    %v326 = vld [vmem:[#allocation7 + $0x120] sm:$0xff]
    %v327 = vld [vmem:[#allocation7 + $0x128] sm:$0xff]
    %v328 = vld [vmem:[#allocation7 + $0x130] sm:$0xff]
    %v329 = vld [vmem:[#allocation7 + $0x138] sm:$0xff]
    %v330 = vld [vmem:[#allocation7 + $0x140] sm:$0xff]
    %v331 = vld [vmem:[#allocation7 + $0x148] sm:$0xff]
    %v332 = vld [vmem:[#allocation7 + $0x150] sm:$0xff]
    %v333 = vld [vmem:[#allocation7 + $0x158] sm:$0xff]
    %v334 = vld [vmem:[#allocation7 + $0x160] sm:$0xff]
    %v335 = vld [vmem:[#allocation7 + $0x168] sm:$0xff]
    %v336 = vld [vmem:[#allocation7 + $0x170] sm:$0xff]
    %v337 = vld [vmem:[#allocation7 + $0x178] sm:$0xff]
    %v338 = vld [vmem:[#allocation7 + $0x180] sm:$0xff]
    %v339 = vld [vmem:[#allocation7 + $0x188] sm:$0xff]
    %v340 = vld [vmem:[#allocation7 + $0x190] sm:$0xff]
    %v341 = vld [vmem:[#allocation7 + $0x198] sm:$0xff]
    %v342 = vld [vmem:[#allocation7 + $0x1a0] sm:$0xff]
    %v343 = vld [vmem:[#allocation7 + $0x1a8] sm:$0xff]
    %v344 = vld [vmem:[#allocation7 + $0x1b0] sm:$0xff]
    %v345 = vld [vmem:[#allocation7 + $0x1b8] sm:$0xff]
    %v346 = vld [vmem:[#allocation7 + $0x1c0] sm:$0xff]
    %v347 = vld [vmem:[#allocation7 + $0x1c8] sm:$0xff]
    %v348 = vld [vmem:[#allocation7 + $0x1d0] sm:$0xff]
    %v349 = vld [vmem:[#allocation7 + $0x1d8] sm:$0xff]
    %v350 = vld [vmem:[#allocation7 + $0x1e0] sm:$0xff]
    %v351 = vld [vmem:[#allocation7 + $0x1e8] sm:$0xff]
    %v352 = vld [vmem:[#allocation7 + $0x1f0] sm:$0xff]
    %v353 = vld [vmem:[#allocation7 + $0x1f8] sm:$0xff]
    %354 = vmatprep.subr.mxu0 %v291
    %355 = vmatpush1.msra.mxu0 %v290
    %356 = vmatprep.subr.mxu0 %v293
    %357 = vmatpush1.msra.mxu0 %v292
    %358 = vmatprep.subr.mxu0 %v295
    %359 = vmatpush1.msra.mxu0 %v294
    %360 = vmatprep.subr.mxu0 %v297
    %361 = vmatpush1.msra.mxu0 %v296
    %362 = vmatprep.subr.mxu0 %v299
    %363 = vmatpush1.msra.mxu0 %v298
    %364 = vmatprep.subr.mxu0 %v301
    %365 = vmatpush1.msra.mxu0 %v300
    %366 = vmatprep.subr.mxu0 %v303
    %367 = vmatpush1.msra.mxu0 %v302
    %368 = vmatprep.subr.mxu0 %v305
    %369 = vmatpush1.msra.mxu0 %v304
    %370 = vmatprep.subr.mxu0 %v307
    %371 = vmatpush1.msra.mxu0 %v306
    %372 = vmatprep.subr.mxu0 %v309
    %373 = vmatpush1.msra.mxu0 %v308
    %374 = vmatprep.subr.mxu0 %v311
    %375 = vmatpush1.msra.mxu0 %v310
    %376 = vmatprep.subr.mxu0 %v313
    %377 = vmatpush1.msra.mxu0 %v312
    %378 = vmatprep.subr.mxu0 %v315
    %379 = vmatpush1.msra.mxu0 %v314
    %380 = vmatprep.subr.mxu0 %v317
    %381 = vmatpush1.msra.mxu0 %v316
    %382 = vmatprep.subr.mxu0 %v319
    %383 = vmatpush1.msra.mxu0 %v318
    %384 = vmatprep.subr.mxu0 %v321
    %385 = vmatpush1.msra.mxu0 %v320
    %386 = vmatprep.subr.mxu0 %v323
    %387 = vmatpush1.msra.mxu0 %v322
    %388 = vmatprep.subr.mxu0 %v325
    %389 = vmatpush1.msra.mxu0 %v324
    %390 = vmatprep.subr.mxu0 %v327
    %391 = vmatpush1.msra.mxu0 %v326
    %392 = vmatprep.subr.mxu0 %v329
    %393 = vmatpush1.msra.mxu0 %v328
    %394 = vmatprep.subr.mxu0 %v331
    %395 = vmatpush1.msra.mxu0 %v330
    %396 = vmatprep.subr.mxu0 %v333
    %397 = vmatpush1.msra.mxu0 %v332
    %398 = vmatprep.subr.mxu0 %v335
    %399 = vmatpush1.msra.mxu0 %v334
    %400 = vmatprep.subr.mxu0 %v337
    %401 = vmatpush1.msra.mxu0 %v336
    %402 = vmatprep.subr.mxu0 %v339
    %403 = vmatpush1.msra.mxu0 %v338
    %404 = vmatprep.subr.mxu0 %v341
    %405 = vmatpush1.msra.mxu0 %v340
    %406 = vmatprep.subr.mxu0 %v343
    %407 = vmatpush1.msra.mxu0 %v342
    %408 = vmatprep.subr.mxu0 %v345
    %409 = vmatpush1.msra.mxu0 %v344
    %410 = vmatprep.subr.mxu0 %v347
    %411 = vmatpush1.msra.mxu0 %v346
    %412 = vmatprep.subr.mxu0 %v349
    %413 = vmatpush1.msra.mxu0 %v348
    %414 = vmatprep.subr.mxu0 %v351
    %415 = vmatpush1.msra.mxu0 %v350
    %416 = vmatprep.subr.mxu0 %v353
    %417 = vmatpush1.msra.mxu0 %v352
    %418 = vmatprep.mubr.f32.mxu0 %v271
    %419 = vmatmul.mubr.f32.gmra.mrb[0].mxu0 %v264
    %v420 = vpop.f32.mrb[0].mxu0
    %v421 = vadd.f32 0.0, %v420
    %v422 = vpop.f32.mrb[0].mxu0
    %v423 = vadd.f32 0.0, %v422
    %424 = vdwg.mxu0
    %v425 = vmul.f32 %v421, 0.0078125
    %v426 = vmul.f32 %v423, 0.0078125
    %427 = vmatprep.subr.mxu0 %v291
    %428 = vmatpush1.msra.mxu0 %v290
    %429 = vmatprep.subr.mxu0 %v293
    %430 = vmatpush1.msra.mxu0 %v292
    %431 = vmatprep.subr.mxu0 %v295
    %432 = vmatpush1.msra.mxu0 %v294
    %433 = vmatprep.subr.mxu0 %v297
    %434 = vmatpush1.msra.mxu0 %v296
    %435 = vmatprep.subr.mxu0 %v299
    %436 = vmatpush1.msra.mxu0 %v298
    %437 = vmatprep.subr.mxu0 %v301
    %438 = vmatpush1.msra.mxu0 %v300
    %439 = vmatprep.subr.mxu0 %v303
    %440 = vmatpush1.msra.mxu0 %v302
    %441 = vmatprep.subr.mxu0 %v305
    %442 = vmatpush1.msra.mxu0 %v304
    %443 = vmatprep.subr.mxu0 %v307
    %444 = vmatpush1.msra.mxu0 %v306
    %445 = vmatprep.subr.mxu0 %v309
    %446 = vmatpush1.msra.mxu0 %v308
    %447 = vmatprep.subr.mxu0 %v311
    %448 = vmatpush1.msra.mxu0 %v310
    %449 = vmatprep.subr.mxu0 %v313
    %450 = vmatpush1.msra.mxu0 %v312
    %451 = vmatprep.subr.mxu0 %v315
    %452 = vmatpush1.msra.mxu0 %v314
    %453 = vmatprep.subr.mxu0 %v317
    %454 = vmatpush1.msra.mxu0 %v316
    %455 = vmatprep.subr.mxu0 %v319
    %456 = vmatpush1.msra.mxu0 %v318
    %457 = vmatprep.subr.mxu0 %v321
    %458 = vmatpush1.msra.mxu0 %v320
    %459 = vmatprep.subr.mxu0 %v323
    %460 = vmatpush1.msra.mxu0 %v322
    %461 = vmatprep.subr.mxu0 %v325
    %462 = vmatpush1.msra.mxu0 %v324
    %463 = vmatprep.subr.mxu0 %v327
    %464 = vmatpush1.msra.mxu0 %v326
    %465 = vmatprep.subr.mxu0 %v329
    %466 = vmatpush1.msra.mxu0 %v328
    %467 = vmatprep.subr.mxu0 %v331
    %468 = vmatpush1.msra.mxu0 %v330
    %469 = vmatprep.subr.mxu0 %v333
    %470 = vmatpush1.msra.mxu0 %v332
    %471 = vmatprep.subr.mxu0 %v335
    %472 = vmatpush1.msra.mxu0 %v334
    %473 = vmatprep.subr.mxu0 %v337
    %474 = vmatpush1.msra.mxu0 %v336
    %475 = vmatprep.subr.mxu0 %v339
    %476 = vmatpush1.msra.mxu0 %v338
    %477 = vmatprep.subr.mxu0 %v341
    %478 = vmatpush1.msra.mxu0 %v340
    %479 = vmatprep.subr.mxu0 %v343
    %480 = vmatpush1.msra.mxu0 %v342
    %481 = vmatprep.subr.mxu0 %v345
    %482 = vmatpush1.msra.mxu0 %v344
    %483 = vmatprep.subr.mxu0 %v347
    %484 = vmatpush1.msra.mxu0 %v346
    %485 = vmatprep.subr.mxu0 %v349
    %486 = vmatpush1.msra.mxu0 %v348
    %487 = vmatprep.subr.mxu0 %v351
    %488 = vmatpush1.msra.mxu0 %v350
    %489 = vmatprep.subr.mxu0 %v353
    %490 = vmatpush1.msra.mxu0 %v352
    %491 = vmatprep.mubr.f32.mxu0 %v289
    %492 = vmatmul.mubr.f32.gmra.mrb[0].mxu0 %v282
    %v493 = vpop.f32.mrb[0].mxu0
    %v494 = vadd.f32 0.0, %v493
    %v495 = vpop.f32.mrb[0].mxu0
    %v496 = vadd.f32 0.0, %v495
    %497 = vdwg.mxu0
    %v498 = vmul.f32 %v494, 0.0078125
    %v499 = vmul.f32 %v496, 0.0078125
    %v500 = vmul.f32 %v425, %v425
    %v501 = vmul.f32 %v426, %v426
    %v502 = vsub.f32 %v498, %v500
    %v503 = vsub.f32 %v499, %v501
    %v504 = vmax.f32 %v502, 0.0
    %v505 = vmax.f32 %v503, 0.0
    %v506 = vadd.f32 %v504, 1e-05
    %v507 = vadd.f32 %v505, 1e-05
    %v508 = vrsqrt.pop %v506
    %v509 = vrsqrt.pop %v507
    %v510 = vlaneseq
    %v511 = vshrl.u32 %v510, 7
    %v512 = vsub.s32 0, %v511
    %v513 = vrot.slane %v425, %v512
    %v514 = vlaneseq
    %v515 = vshrl.u32 %v514, 7
    %v516 = vsub.s32 0, %v515
    %v517 = vrot.slane %v426, %v516
    %v518 = vsub.f32 %v250, %v513
    %v519 = vsub.f32 %v252, %v517
    %v520 = vsub.f32 %v254, %v513
    %v521 = vsub.f32 %v256, %v517
    %v522 = vld [vmem:[%s16] sm:$0x3]
    %v524 = vlaneseq
    %v525 = vshrl.u32 %v524, 7
    %v526 = vsub.s32 0, %v525
    %v527 = vrot.slane %v522, %v526
    %v528 = vlaneseq
    %v529 = vshrl.u32 %v528, 7
    %v530 = vsub.s32 1, %v529
    %v531 = vrot.slane %v522, %v530
    %v534 = vmul.f32 %v508, %v527
    %v535 = vmul.f32 %v509, %v531
    %v536 = vlaneseq
    %v537 = vshrl.u32 %v536, 7
    %v538 = vsub.s32 0, %v537
    %v539 = vrot.slane %v534, %v538
    %v540 = vlaneseq
    %v541 = vshrl.u32 %v540, 7
    %v542 = vsub.s32 0, %v541
    %v543 = vrot.slane %v535, %v542
    %v544 = vmul.f32 %v518, %v539
    %v545 = vmul.f32 %v519, %v543
    %v546 = vmul.f32 %v520, %v539
    %v547 = vmul.f32 %v521, %v543
    %v548 = vld [vmem:[%s17] sm:$0x3]
    %v550 = vlaneseq
    %v551 = vshrl.u32 %v550, 7
    %v552 = vsub.s32 0, %v551
    %v553 = vrot.slane %v548, %v552
    %v554 = vlaneseq
    %v555 = vshrl.u32 %v554, 7
    %v556 = vsub.s32 1, %v555
    %v557 = vrot.slane %v548, %v556
    %v560 = vadd.f32 %v544, %v553
    %v561 = vadd.f32 %v545, %v557
    %v562 = vadd.f32 %v546, %v553
    %v563 = vadd.f32 %v547, %v557
    %v564 = vadd.f32 %v116, %v117
    %v565 = vrot.slane %v564, 4
    %v566 = vadd.f32 %v564, %v565
    %v567 = vrot.slane %v566, 2
    %v568 = vadd.f32 %v566, %v567
    %v569 = vrot.slane %v568, 1
    %v570 = vadd.f32 %v568, %v569
    %v571 = vmul.f32 %v116, %v116
    %v572 = vmul.f32 %v117, %v117
    %v573 = vadd.f32 %v571, %v572
    %v574 = vrot.slane %v573, 4
    %v575 = vadd.f32 %v573, %v574
    %v576 = vrot.slane %v575, 2
    %v577 = vadd.f32 %v575, %v576
    %v578 = vrot.slane %v577, 1
    %v579 = vadd.f32 %v577, %v578
    %v580 = vld [vmem:[%s5] sm:$0xff]
    %v581 = vld [vmem:[%s5 + $0x8] sm:$0xff]
    %v582 = vld [vmem:[%s5 + $0x10] sm:$0xff]
    %v583 = vld [vmem:[%s5 + $0x18] sm:$0xff]
    %v584 = vld [vmem:[%s5 + $0x20] sm:$0xff]
    %v585 = vld [vmem:[%s5 + $0x28] sm:$0xff]
    %v586 = vld [vmem:[%s5 + $0x30] sm:$0xff]
    %v587 = vld [vmem:[%s5 + $0x38] sm:$0xff]
    %v588 = vld [vmem:[%s5 + $0x40] sm:$0xff]
    %v589 = vld [vmem:[%s5 + $0x48] sm:$0xff]
    %v590 = vld [vmem:[%s5 + $0x50] sm:$0xff]
    %v591 = vld [vmem:[%s5 + $0x58] sm:$0xff]
    %v592 = vld [vmem:[%s5 + $0x60] sm:$0xff]
    %v593 = vld [vmem:[%s5 + $0x68] sm:$0xff]
    %v594 = vld [vmem:[%s5 + $0x70] sm:$0xff]
    %v595 = vld [vmem:[%s5 + $0x78] sm:$0xff]
    %596 = vmatprep.subr.mxu0 0.0
    %597 = vmatpush1.msra.mxu0 %v580
    %598 = vmatprep.subr.mxu0 0.0
    %599 = vmatpush1.msra.mxu0 %v581
    %600 = vmatprep.subr.mxu0 0.0
    %601 = vmatpush1.msra.mxu0 %v582
    %602 = vmatprep.subr.mxu0 0.0
    %603 = vmatpush1.msra.mxu0 %v583
    %604 = vmatprep.subr.mxu0 0.0
    %605 = vmatpush1.msra.mxu0 %v584
    %606 = vmatprep.subr.mxu0 0.0
    %607 = vmatpush1.msra.mxu0 %v585
    %608 = vmatprep.subr.mxu0 0.0
    %609 = vmatpush1.msra.mxu0 %v586
    %610 = vmatprep.subr.mxu0 0.0
    %611 = vmatpush1.msra.mxu0 %v587
    %612 = vmatprep.subr.mxu0 0.0
    %613 = vmatpush1.msra.mxu0 %v588
    %614 = vmatprep.subr.mxu0 0.0
    %615 = vmatpush1.msra.mxu0 %v589
    %616 = vmatprep.subr.mxu0 0.0
    %617 = vmatpush1.msra.mxu0 %v590
    %618 = vmatprep.subr.mxu0 0.0
    %619 = vmatpush1.msra.mxu0 %v591
    %620 = vmatprep.subr.mxu0 0.0
    %621 = vmatpush1.msra.mxu0 %v592
    %622 = vmatprep.subr.mxu0 0.0
    %623 = vmatpush1.msra.mxu0 %v593
    %624 = vmatprep.subr.mxu0 0.0
    %625 = vmatpush1.msra.mxu0 %v594
    %626 = vmatprep.subr.mxu0 0.0
    %627 = vmatpush1.msra.mxu0 %v595
    %628 = vmatprep.subr.mxu0 0.0
    %629 = vmatpush1.msra.mxu0 0.0
    %630 = vmatprep.subr.mxu0 0.0
    %631 = vmatpush1.msra.mxu0 0.0
    %632 = vmatprep.subr.mxu0 0.0
    %633 = vmatpush1.msra.mxu0 0.0
    %634 = vmatprep.subr.mxu0 0.0
    %635 = vmatpush1.msra.mxu0 0.0
    %636 = vmatprep.subr.mxu0 0.0
    %637 = vmatpush1.msra.mxu0 0.0
    %638 = vmatprep.subr.mxu0 0.0
    %639 = vmatpush1.msra.mxu0 0.0
    %640 = vmatprep.subr.mxu0 0.0
    %641 = vmatpush1.msra.mxu0 0.0
    %642 = vmatprep.subr.mxu0 0.0
    %643 = vmatpush1.msra.mxu0 0.0
    %644 = vmatprep.subr.mxu0 0.0
    %645 = vmatpush1.msra.mxu0 0.0
    %646 = vmatprep.subr.mxu0 0.0
    %647 = vmatpush1.msra.mxu0 0.0
    %648 = vmatprep.subr.mxu0 0.0
    %649 = vmatpush1.msra.mxu0 0.0
    %650 = vmatprep.subr.mxu0 0.0
    %651 = vmatpush1.msra.mxu0 0.0
    %652 = vmatprep.subr.mxu0 0.0
    %653 = vmatpush1.msra.mxu0 0.0
    %654 = vmatprep.subr.mxu0 0.0
    %655 = vmatpush1.msra.mxu0 0.0
    %656 = vmatprep.subr.mxu0 0.0
    %657 = vmatpush1.msra.mxu0 0.0
    %658 = vmatprep.subr.mxu0 0.0
    %659 = vmatpush1.msra.mxu0 0.0
    %660 = vmatprep.mubr.f32.mxu0 0.0
    %661 = vmatmul.mubr.f32.gmra.mrb[0].mxu0 %v570
    %v662 = vpop.f32.mrb[0].mxu0
    %v663 = vadd.f32 0.0, %v662
    %v664 = vpop.f32.mrb[0].mxu0
    %665 = vdwg.mxu0
    %v666 = vmul.f32 %v663, 0.0078125
    %667 = vmatprep.subr.mxu0 0.0
    %668 = vmatpush1.msra.mxu0 %v580
    %669 = vmatprep.subr.mxu0 0.0
    %670 = vmatpush1.msra.mxu0 %v581
    %671 = vmatprep.subr.mxu0 0.0
    %672 = vmatpush1.msra.mxu0 %v582
    %673 = vmatprep.subr.mxu0 0.0
    %674 = vmatpush1.msra.mxu0 %v583
    %675 = vmatprep.subr.mxu0 0.0
    %676 = vmatpush1.msra.mxu0 %v584
    %677 = vmatprep.subr.mxu0 0.0
    %678 = vmatpush1.msra.mxu0 %v585
    %679 = vmatprep.subr.mxu0 0.0
    %680 = vmatpush1.msra.mxu0 %v586
    %681 = vmatprep.subr.mxu0 0.0
    %682 = vmatpush1.msra.mxu0 %v587
    %683 = vmatprep.subr.mxu0 0.0
    %684 = vmatpush1.msra.mxu0 %v588
    %685 = vmatprep.subr.mxu0 0.0
    %686 = vmatpush1.msra.mxu0 %v589
    %687 = vmatprep.subr.mxu0 0.0
    %688 = vmatpush1.msra.mxu0 %v590
    %689 = vmatprep.subr.mxu0 0.0
    %690 = vmatpush1.msra.mxu0 %v591
    %691 = vmatprep.subr.mxu0 0.0
    %692 = vmatpush1.msra.mxu0 %v592
    %693 = vmatprep.subr.mxu0 0.0
    %694 = vmatpush1.msra.mxu0 %v593
    %695 = vmatprep.subr.mxu0 0.0
    %696 = vmatpush1.msra.mxu0 %v594
    %697 = vmatprep.subr.mxu0 0.0
    %698 = vmatpush1.msra.mxu0 %v595
    %699 = vmatprep.subr.mxu0 0.0
    %700 = vmatpush1.msra.mxu0 0.0
    %701 = vmatprep.subr.mxu0 0.0
    %702 = vmatpush1.msra.mxu0 0.0
    %703 = vmatprep.subr.mxu0 0.0
    %704 = vmatpush1.msra.mxu0 0.0
    %705 = vmatprep.subr.mxu0 0.0
    %706 = vmatpush1.msra.mxu0 0.0
    %707 = vmatprep.subr.mxu0 0.0
    %708 = vmatpush1.msra.mxu0 0.0
    %709 = vmatprep.subr.mxu0 0.0
    %710 = vmatpush1.msra.mxu0 0.0
    %711 = vmatprep.subr.mxu0 0.0
    %712 = vmatpush1.msra.mxu0 0.0
    %713 = vmatprep.subr.mxu0 0.0
    %714 = vmatpush1.msra.mxu0 0.0
    %715 = vmatprep.subr.mxu0 0.0
    %716 = vmatpush1.msra.mxu0 0.0
    %717 = vmatprep.subr.mxu0 0.0
    %718 = vmatpush1.msra.mxu0 0.0
    %719 = vmatprep.subr.mxu0 0.0
    %720 = vmatpush1.msra.mxu0 0.0
    %721 = vmatprep.subr.mxu0 0.0
    %722 = vmatpush1.msra.mxu0 0.0
    %723 = vmatprep.subr.mxu0 0.0
    %724 = vmatpush1.msra.mxu0 0.0
    %725 = vmatprep.subr.mxu0 0.0
    %726 = vmatpush1.msra.mxu0 0.0
    %727 = vmatprep.subr.mxu0 0.0
    %728 = vmatpush1.msra.mxu0 0.0
    %729 = vmatprep.subr.mxu0 0.0
    %730 = vmatpush1.msra.mxu0 0.0
    %731 = vmatprep.mubr.f32.mxu0 0.0
    %732 = vmatmul.mubr.f32.gmra.mrb[0].mxu0 %v579
    %v733 = vpop.f32.mrb[0].mxu0
    %v734 = vadd.f32 0.0, %v733
    %v735 = vpop.f32.mrb[0].mxu0
    %736 = vdwg.mxu0
    %v737 = vmul.f32 %v734, 0.0078125
    %v738 = vmul.f32 %v666, %v666
    %v739 = vsub.f32 %v737, %v738
    %v740 = vmax.f32 %v739, 0.0
    %v741 = vadd.f32 %v740, 1e-05
    %v742 = vrsqrt.pop %v741
    %v743 = vlaneseq
    %v744 = vshrl.u32 %v743, 7
    %v745 = vsub.s32 0, %v744
    %v746 = vrot.slane %v666, %v745
    %v747 = vsub.f32 %v116, %v746
    %v748 = vsub.f32 %v117, %v746
    %v749 = vld [vmem:[%s3] sm:$0x1]
    %v750 = vmul.f32 %v742, %v749
    %v751 = vlaneseq
    %v752 = vshrl.u32 %v751, 7
    %v753 = vsub.s32 0, %v752
    %v754 = vrot.slane %v750, %v753
    %v755 = vmul.f32 %v747, %v754
    %v756 = vmul.f32 %v748, %v754
    %v757 = vld [vmem:[%s4] sm:$0x1]
    %v759 = vlaneseq
    %v760 = vshrl.u32 %v759, 7
    %v761 = vsub.s32 0, %v760
    %v762 = vrot.slane %v757, %v761
    %v764 = vadd.f32 %v755, %v762
    %v765 = vadd.f32 %v756, %v762
    %vm766 = vcmp.gt.f32.partialorder %v764, 0.0
    %vm767 = vcmp.gt.f32.partialorder %v765, 0.0
    %v768 = vstv %s110
    %v769 = vmul.f32 %v768, %v764
    %v770 = vmul.f32 %v768, %v765
    %v771 = vsel %vm766, %v764, %v769
    %v772 = vsel %vm767, %v765, %v770
    %v773 = vpack.c.bf16 %v772, %v771
    %v774 = vld [vmem:[#allocation4] sm:$0xff]
    %v775 = vld [vmem:[#allocation4 + $0x8] sm:$0xff]
    %v776 = vld [vmem:[#allocation4 + $0x10] sm:$0xff]
    %v777 = vld [vmem:[#allocation4 + $0x18] sm:$0xff]
    %v778 = vld [vmem:[#allocation4 + $0x20] sm:$0xff]
    %v779 = vld [vmem:[#allocation4 + $0x28] sm:$0xff]
    %v780 = vld [vmem:[#allocation4 + $0x30] sm:$0xff]
    %v781 = vld [vmem:[#allocation4 + $0x38] sm:$0xff]
    %v782 = vld [vmem:[#allocation4 + $0x40] sm:$0xff]
    %v783 = vld [vmem:[#allocation4 + $0x48] sm:$0xff]
    %v784 = vld [vmem:[#allocation4 + $0x50] sm:$0xff]
    %v785 = vld [vmem:[#allocation4 + $0x58] sm:$0xff]
    %v786 = vld [vmem:[#allocation4 + $0x60] sm:$0xff]
    %v787 = vld [vmem:[#allocation4 + $0x68] sm:$0xff]
    %v788 = vld [vmem:[#allocation4 + $0x70] sm:$0xff]
    %v789 = vld [vmem:[#allocation4 + $0x78] sm:$0xff]
    %v806 = vunpack.c.l.b16 %v774
    %v807 = vunpack.c.h.b16 %v774
    %v808 = vunpack.c.l.b16 %v775
    %v809 = vunpack.c.h.b16 %v775
    %v810 = vunpack.c.l.b16 %v776
    %v811 = vunpack.c.h.b16 %v776
    %v812 = vunpack.c.l.b16 %v777
    %v813 = vunpack.c.h.b16 %v777
    %v814 = vunpack.c.l.b16 %v778
    %v815 = vunpack.c.h.b16 %v778
    %v816 = vunpack.c.l.b16 %v779
    %v817 = vunpack.c.h.b16 %v779
    %v818 = vunpack.c.l.b16 %v780
    %v819 = vunpack.c.h.b16 %v780
    %v820 = vunpack.c.l.b16 %v781
    %v821 = vunpack.c.h.b16 %v781
    %v822 = vunpack.c.l.b16 %v782
    %v823 = vunpack.c.h.b16 %v782
    %v824 = vunpack.c.l.b16 %v783
    %v825 = vunpack.c.h.b16 %v783
    %v826 = vunpack.c.l.b16 %v784
    %v827 = vunpack.c.h.b16 %v784
    %v828 = vunpack.c.l.b16 %v785
    %v829 = vunpack.c.h.b16 %v785
    %v830 = vunpack.c.l.b16 %v786
    %v831 = vunpack.c.h.b16 %v786
    %v832 = vunpack.c.l.b16 %v787
    %v833 = vunpack.c.h.b16 %v787
    %v834 = vunpack.c.l.b16 %v788
    %v835 = vunpack.c.h.b16 %v788
    %v836 = vunpack.c.l.b16 %v789
    %v837 = vunpack.c.h.b16 %v789
    %v838 = vpack.c.b16 %v808, %v806
    %v839 = vpack.c.b16 %v809, %v807
    %v840 = vpack.c.b16 %v812, %v810
    %v841 = vpack.c.b16 %v813, %v811
    %v842 = vpack.c.b16 %v816, %v814
    %v843 = vpack.c.b16 %v817, %v815
    %v844 = vpack.c.b16 %v820, %v818
    %v845 = vpack.c.b16 %v821, %v819
    %v846 = vpack.c.b16 %v824, %v822
    %v847 = vpack.c.b16 %v825, %v823
    %v848 = vpack.c.b16 %v828, %v826
    %v849 = vpack.c.b16 %v829, %v827
    %v850 = vpack.c.b16 %v832, %v830
    %v851 = vpack.c.b16 %v833, %v831
    %v852 = vpack.c.b16 %v836, %v834
    %v853 = vpack.c.b16 %v837, %v835
    %870 = vmatprep.subr.bf16.mxu0 %v839
    %871 = vmatpush1.bf16.msra.mxu0 %v838
    %872 = vmatprep.subr.bf16.mxu0 %v841
    %873 = vmatpush1.bf16.msra.mxu0 %v840
    %874 = vmatprep.subr.bf16.mxu0 %v843
    %875 = vmatpush1.bf16.msra.mxu0 %v842
    %876 = vmatprep.subr.bf16.mxu0 %v845
    %877 = vmatpush1.bf16.msra.mxu0 %v844
    %878 = vmatprep.subr.bf16.mxu0 %v847
    %879 = vmatpush1.bf16.msra.mxu0 %v846
    %880 = vmatprep.subr.bf16.mxu0 %v849
    %881 = vmatpush1.bf16.msra.mxu0 %v848
    %882 = vmatprep.subr.bf16.mxu0 %v851
    %883 = vmatpush1.bf16.msra.mxu0 %v850
    %884 = vmatprep.subr.bf16.mxu0 %v853
    %885 = vmatpush1.bf16.msra.mxu0 %v852
    %886 = vmatprep.subr.bf16.mxu0 0
    %887 = vmatpush1.bf16.msra.mxu0 0
    %888 = vmatprep.subr.bf16.mxu0 0
    %889 = vmatpush1.bf16.msra.mxu0 0
    %890 = vmatprep.subr.bf16.mxu0 0
    %891 = vmatpush1.bf16.msra.mxu0 0
    %892 = vmatprep.subr.bf16.mxu0 0
    %893 = vmatpush1.bf16.msra.mxu0 0
    %894 = vmatprep.subr.bf16.mxu0 0
    %895 = vmatpush1.bf16.msra.mxu0 0
    %896 = vmatprep.subr.bf16.mxu0 0
    %897 = vmatpush1.bf16.msra.mxu0 0
    %898 = vmatprep.subr.bf16.mxu0 0
    %899 = vmatpush1.bf16.msra.mxu0 0
    %900 = vmatprep.subr.bf16.mxu0 0
    %901 = vmatpush1.bf16.msra.mxu0 0
    %902 = vmatprep.mubr.bf16.mxu0 0
    %903 = vmatmul.mubr.bf16.gmra.mrb[0].mxu0 %v773
    %v904 = vpop.f32.mrb[0].mxu0
    %v905 = vadd.f32 0.0, %v904
    %v906 = vpop.f32.mrb[0].mxu0
    %v907 = vadd.f32 0.0, %v906
    %v908 = vpop.f32.mrb[0].mxu0
    %v909 = vadd.f32 0.0, %v908
    %v910 = vpop.f32.mrb[0].mxu0
    %v911 = vadd.f32 0.0, %v910
    %912 = vdwg.mxu0
    %s913 = scalar_lea.vmem [#allocation4], 128
    %v914 = vld [vmem:[%s913] sm:$0xff]
    %v915 = vld [vmem:[%s913 + $0x8] sm:$0xff]
    %v916 = vld [vmem:[%s913 + $0x10] sm:$0xff]
    %v917 = vld [vmem:[%s913 + $0x18] sm:$0xff]
    %v918 = vld [vmem:[%s913 + $0x20] sm:$0xff]
    %v919 = vld [vmem:[%s913 + $0x28] sm:$0xff]
    %v920 = vld [vmem:[%s913 + $0x30] sm:$0xff]
    %v921 = vld [vmem:[%s913 + $0x38] sm:$0xff]
    %v922 = vld [vmem:[%s913 + $0x40] sm:$0xff]
    %v923 = vld [vmem:[%s913 + $0x48] sm:$0xff]
    %v924 = vld [vmem:[%s913 + $0x50] sm:$0xff]
    %v925 = vld [vmem:[%s913 + $0x58] sm:$0xff]
    %v926 = vld [vmem:[%s913 + $0x60] sm:$0xff]
    %v927 = vld [vmem:[%s913 + $0x68] sm:$0xff]
    %v928 = vld [vmem:[%s913 + $0x70] sm:$0xff]
    %v929 = vld [vmem:[%s913 + $0x78] sm:$0xff]
    %s930 = scalar_lea.vmem [#allocation4], 256
    %v931 = vld [vmem:[%s930] sm:$0xff]
    %v932 = vld [vmem:[%s930 + $0x8] sm:$0xff]
    %v933 = vld [vmem:[%s930 + $0x10] sm:$0xff]
    %v934 = vld [vmem:[%s930 + $0x18] sm:$0xff]
    %v935 = vld [vmem:[%s930 + $0x20] sm:$0xff]
    %v936 = vld [vmem:[%s930 + $0x28] sm:$0xff]
    %v937 = vld [vmem:[%s930 + $0x30] sm:$0xff]
    %v938 = vld [vmem:[%s930 + $0x38] sm:$0xff]
    %v939 = vld [vmem:[%s930 + $0x40] sm:$0xff]
    %v940 = vld [vmem:[%s930 + $0x48] sm:$0xff]
    %v941 = vld [vmem:[%s930 + $0x50] sm:$0xff]
    %v942 = vld [vmem:[%s930 + $0x58] sm:$0xff]
    %v943 = vld [vmem:[%s930 + $0x60] sm:$0xff]
    %v944 = vld [vmem:[%s930 + $0x68] sm:$0xff]
    %v945 = vld [vmem:[%s930 + $0x70] sm:$0xff]
    %v946 = vld [vmem:[%s930 + $0x78] sm:$0xff]
    %v963 = vunpack.c.l.b16 %v931
    %v964 = vunpack.c.h.b16 %v931
    %v965 = vunpack.c.l.b16 %v932
    %v966 = vunpack.c.h.b16 %v932
    %v967 = vunpack.c.l.b16 %v933
    %v968 = vunpack.c.h.b16 %v933
    %v969 = vunpack.c.l.b16 %v934
    %v970 = vunpack.c.h.b16 %v934
    %v971 = vunpack.c.l.b16 %v935
    %v972 = vunpack.c.h.b16 %v935
    %v973 = vunpack.c.l.b16 %v936
    %v974 = vunpack.c.h.b16 %v936
    %v975 = vunpack.c.l.b16 %v937
    %v976 = vunpack.c.h.b16 %v937
    %v977 = vunpack.c.l.b16 %v938
    %v978 = vunpack.c.h.b16 %v938
    %v979 = vunpack.c.l.b16 %v939
    %v980 = vunpack.c.h.b16 %v939
    %v981 = vunpack.c.l.b16 %v940
    %v982 = vunpack.c.h.b16 %v940
    %v983 = vunpack.c.l.b16 %v941
    %v984 = vunpack.c.h.b16 %v941
    %v985 = vunpack.c.l.b16 %v942
    %v986 = vunpack.c.h.b16 %v942
    %v987 = vunpack.c.l.b16 %v943
    %v988 = vunpack.c.h.b16 %v943
    %v989 = vunpack.c.l.b16 %v944
    %v990 = vunpack.c.h.b16 %v944
    %v991 = vunpack.c.l.b16 %v945
    %v992 = vunpack.c.h.b16 %v945
    %v993 = vunpack.c.l.b16 %v946
    %v994 = vunpack.c.h.b16 %v946
    %v995 = vpack.c.b16 %v965, %v963
    %v996 = vpack.c.b16 %v966, %v964
    %v997 = vpack.c.b16 %v969, %v967
    %v998 = vpack.c.b16 %v970, %v968
    %v999 = vpack.c.b16 %v973, %v971
    %v1000 = vpack.c.b16 %v974, %v972
    %v1001 = vpack.c.b16 %v977, %v975
    %v1002 = vpack.c.b16 %v978, %v976
    %v1003 = vpack.c.b16 %v981, %v979
    %v1004 = vpack.c.b16 %v982, %v980
    %v1005 = vpack.c.b16 %v985, %v983
    %v1006 = vpack.c.b16 %v986, %v984
    %v1007 = vpack.c.b16 %v989, %v987
    %v1008 = vpack.c.b16 %v990, %v988
    %v1009 = vpack.c.b16 %v993, %v991
    %v1010 = vpack.c.b16 %v994, %v992
    %1027 = vmatprep.subr.bf16.mxu0 %v996
    %1028 = vmatpush1.bf16.msra.mxu0 %v995
    %1029 = vmatprep.subr.bf16.mxu0 %v998
    %1030 = vmatpush1.bf16.msra.mxu0 %v997
    %1031 = vmatprep.subr.bf16.mxu0 %v1000
    %1032 = vmatpush1.bf16.msra.mxu0 %v999
    %1033 = vmatprep.subr.bf16.mxu0 %v1002
    %1034 = vmatpush1.bf16.msra.mxu0 %v1001
    %1035 = vmatprep.subr.bf16.mxu0 %v1004
    %1036 = vmatpush1.bf16.msra.mxu0 %v1003
    %1037 = vmatprep.subr.bf16.mxu0 %v1006
    %1038 = vmatpush1.bf16.msra.mxu0 %v1005
    %1039 = vmatprep.subr.bf16.mxu0 %v1008
    %1040 = vmatpush1.bf16.msra.mxu0 %v1007
    %1041 = vmatprep.subr.bf16.mxu0 %v1010
    %1042 = vmatpush1.bf16.msra.mxu0 %v1009
    %1043 = vmatprep.subr.bf16.mxu0 0
    %1044 = vmatpush1.bf16.msra.mxu0 0
    %1045 = vmatprep.subr.bf16.mxu0 0
    %1046 = vmatpush1.bf16.msra.mxu0 0
    %1047 = vmatprep.subr.bf16.mxu0 0
    %1048 = vmatpush1.bf16.msra.mxu0 0
    %1049 = vmatprep.subr.bf16.mxu0 0
    %1050 = vmatpush1.bf16.msra.mxu0 0
    %1051 = vmatprep.subr.bf16.mxu0 0
    %1052 = vmatpush1.bf16.msra.mxu0 0
    %1053 = vmatprep.subr.bf16.mxu0 0
    %1054 = vmatpush1.bf16.msra.mxu0 0
    %1055 = vmatprep.subr.bf16.mxu0 0
    %1056 = vmatpush1.bf16.msra.mxu0 0
    %1057 = vmatprep.subr.bf16.mxu0 0
    %1058 = vmatpush1.bf16.msra.mxu0 0
    %1059 = vmatprep.mubr.bf16.mxu0 0
    %1060 = vmatmul.mubr.bf16.gmra.mrb[0].mxu0 %v773
    %v1061 = vpop.f32.mrb[0].mxu0
    %v1062 = vadd.f32 0.0, %v1061
    %v1063 = vpop.f32.mrb[0].mxu0
    %v1064 = vadd.f32 0.0, %v1063
    %v1065 = vpop.f32.mrb[0].mxu0
    %v1066 = vadd.f32 0.0, %v1065
    %v1067 = vpop.f32.mrb[0].mxu0
    %v1068 = vadd.f32 0.0, %v1067
    %1069 = vdwg.mxu0
    %v1070 = vrot.slane %v905, 7
    %v1071 = vrot.slane %v907, 7
    %v1072 = vrot.slane %v909, 7
    %v1073 = vrot.slane %v911, 7
    %v1074 = vlaneseq
    %v1075 = vshrl.u32 %v1074, 7
    %vm1076 = vcmp.lt.s32.totalorder %v1075, 1
    %v1077 = vsel %vm1076, %v1070, %v1072
    %v1078 = vsel %vm1076, %v1071, %v1073
    %v1079 = vsel %vm1076, %v1072, %v1070
    %v1080 = vsel %vm1076, %v1073, %v1071
    %1082 = vset.pattern.permute.xlu0 0
    %1083 = vperm.xlu0 %1082, %v112
    %v1084 = vpop.permute.xlu0 %1083
    %1087 = vset.pattern.permute.xlu0 0
    %1088 = vperm.xlu0 %1087, %v113
    %v1089 = vpop.permute.xlu0 %1088
    %v1091 = vmul.f32 %v1079, %v1084
    %v1092 = vmul.f32 %v1080, %v1084
    %v1093 = vmul.f32 %v1077, %v1089
    %v1094 = vmul.f32 %v1078, %v1089
    %v1095 = vrot.slane %v1062, 1
    %v1096 = vrot.slane %v1064, 1
    %v1097 = vrot.slane %v1066, 1
    %v1098 = vrot.slane %v1068, 1
    %vm1099 = vcmp.lt.s32.totalorder %v1075, 7
    %v1100 = vsel %vm1099, %v1095, %v1097
    %v1101 = vsel %vm1099, %v1096, %v1098
    %v1102 = vsel %vm1099, %v1097, %v1095
    %v1103 = vsel %vm1099, %v1098, %v1096
    %1105 = vset.pattern.permute.xlu0 0
    %1106 = vperm.xlu0 %1105, %v114
    %v1107 = vpop.permute.xlu0 %1106
    %1110 = vset.pattern.permute.xlu0 0
    %1111 = vperm.xlu0 %1110, %v115
    %v1112 = vpop.permute.xlu0 %1111
    %v1114 = vmul.f32 %v1100, %v1107
    %v1115 = vmul.f32 %v1101, %v1107
    %v1116 = vmul.f32 %v1102, %v1112
    %v1117 = vmul.f32 %v1103, %v1112
    %v1134 = vunpack.c.l.b16 %v914
    %v1135 = vunpack.c.h.b16 %v914
    %v1136 = vunpack.c.l.b16 %v915
    %v1137 = vunpack.c.h.b16 %v915
    %v1138 = vunpack.c.l.b16 %v916
    %v1139 = vunpack.c.h.b16 %v916
    %v1140 = vunpack.c.l.b16 %v917
    %v1141 = vunpack.c.h.b16 %v917
    %v1142 = vunpack.c.l.b16 %v918
    %v1143 = vunpack.c.h.b16 %v918
    %v1144 = vunpack.c.l.b16 %v919
    %v1145 = vunpack.c.h.b16 %v919
    %v1146 = vunpack.c.l.b16 %v920
    %v1147 = vunpack.c.h.b16 %v920
    %v1148 = vunpack.c.l.b16 %v921
    %v1149 = vunpack.c.h.b16 %v921
    %v1150 = vunpack.c.l.b16 %v922
    %v1151 = vunpack.c.h.b16 %v922
    %v1152 = vunpack.c.l.b16 %v923
    %v1153 = vunpack.c.h.b16 %v923
    %v1154 = vunpack.c.l.b16 %v924
    %v1155 = vunpack.c.h.b16 %v924
    %v1156 = vunpack.c.l.b16 %v925
    %v1157 = vunpack.c.h.b16 %v925
    %v1158 = vunpack.c.l.b16 %v926
    %v1159 = vunpack.c.h.b16 %v926
    %v1160 = vunpack.c.l.b16 %v927
    %v1161 = vunpack.c.h.b16 %v927
    %v1162 = vunpack.c.l.b16 %v928
    %v1163 = vunpack.c.h.b16 %v928
    %v1164 = vunpack.c.l.b16 %v929
    %v1165 = vunpack.c.h.b16 %v929
    %v1166 = vpack.c.b16 %v1136, %v1134
    %v1167 = vpack.c.b16 %v1137, %v1135
    %v1168 = vpack.c.b16 %v1140, %v1138
    %v1169 = vpack.c.b16 %v1141, %v1139
    %v1170 = vpack.c.b16 %v1144, %v1142
    %v1171 = vpack.c.b16 %v1145, %v1143
    %v1172 = vpack.c.b16 %v1148, %v1146
    %v1173 = vpack.c.b16 %v1149, %v1147
    %v1174 = vpack.c.b16 %v1152, %v1150
    %v1175 = vpack.c.b16 %v1153, %v1151
    %v1176 = vpack.c.b16 %v1156, %v1154
    %v1177 = vpack.c.b16 %v1157, %v1155
    %v1178 = vpack.c.b16 %v1160, %v1158
    %v1179 = vpack.c.b16 %v1161, %v1159
    %v1180 = vpack.c.b16 %v1164, %v1162
    %v1181 = vpack.c.b16 %v1165, %v1163
    %1198 = vmatprep.subr.bf16.mxu0 %v1167
    %1199 = vmatpush1.bf16.msra.mxu0 %v1166
    %1200 = vmatprep.subr.bf16.mxu0 %v1169
    %1201 = vmatpush1.bf16.msra.mxu0 %v1168
    %1202 = vmatprep.subr.bf16.mxu0 %v1171
    %1203 = vmatpush1.bf16.msra.mxu0 %v1170
    %1204 = vmatprep.subr.bf16.mxu0 %v1173
    %1205 = vmatpush1.bf16.msra.mxu0 %v1172
    %1206 = vmatprep.subr.bf16.mxu0 %v1175
    %1207 = vmatpush1.bf16.msra.mxu0 %v1174
    %1208 = vmatprep.subr.bf16.mxu0 %v1177
    %1209 = vmatpush1.bf16.msra.mxu0 %v1176
    %1210 = vmatprep.subr.bf16.mxu0 %v1179
    %1211 = vmatpush1.bf16.msra.mxu0 %v1178
    %1212 = vmatprep.subr.bf16.mxu0 %v1181
    %1213 = vmatpush1.bf16.msra.mxu0 %v1180
    %1214 = vmatprep.subr.bf16.mxu0 0
    %1215 = vmatpush1.bf16.msra.mxu0 0
    %1216 = vmatprep.subr.bf16.mxu0 0
    %1217 = vmatpush1.bf16.msra.mxu0 0
    %1218 = vmatprep.subr.bf16.mxu0 0
    %1219 = vmatpush1.bf16.msra.mxu0 0
    %1220 = vmatprep.subr.bf16.mxu0 0
    %1221 = vmatpush1.bf16.msra.mxu0 0
    %1222 = vmatprep.subr.bf16.mxu0 0
    %1223 = vmatpush1.bf16.msra.mxu0 0
    %1224 = vmatprep.subr.bf16.mxu0 0
    %1225 = vmatpush1.bf16.msra.mxu0 0
    %1226 = vmatprep.subr.bf16.mxu0 0
    %1227 = vmatpush1.bf16.msra.mxu0 0
    %1228 = vmatprep.subr.bf16.mxu0 0
    %1229 = vmatpush1.bf16.msra.mxu0 0
    %1230 = vmatprep.mubr.bf16.mxu0 0
    %1231 = vmatmul.mubr.bf16.gmra.mrb[0].mxu0 %v773
    %v1232 = vpop.f32.mrb[0].mxu0
    %v1233 = vadd.f32 %v1091, %v1232
    %v1234 = vpop.f32.mrb[0].mxu0
    %v1235 = vadd.f32 %v1092, %v1234
    %v1236 = vpop.f32.mrb[0].mxu0
    %v1237 = vadd.f32 %v1093, %v1236
    %v1238 = vpop.f32.mrb[0].mxu0
    %v1239 = vadd.f32 %v1094, %v1238
    %1240 = vdwg.mxu0
    %v1241 = vadd.f32 %v1233, %v1114
    %v1242 = vadd.f32 %v1235, %v1115
    %v1243 = vadd.f32 %v1237, %v1116
    %v1244 = vadd.f32 %v1239, %v1117
    %v1245 = vadd.f32 %v1241, %v1243
    %v1246 = vrot.slane %v1245, 4
    %v1247 = vadd.f32 %v1245, %v1246
    %v1248 = vrot.slane %v1247, 2
    %v1249 = vadd.f32 %v1247, %v1248
    %v1250 = vrot.slane %v1249, 1
    %v1251 = vadd.f32 %v1249, %v1250
    %v1252 = vadd.f32 %v1242, %v1244
    %v1253 = vrot.slane %v1252, 4
    %v1254 = vadd.f32 %v1252, %v1253
    %v1255 = vrot.slane %v1254, 2
    %v1256 = vadd.f32 %v1254, %v1255
    %v1257 = vrot.slane %v1256, 1
    %v1258 = vadd.f32 %v1256, %v1257
    %v1259 = vmul.f32 %v1241, %v1241
    %v1260 = vmul.f32 %v1242, %v1242
    %v1261 = vmul.f32 %v1243, %v1243
    %v1262 = vmul.f32 %v1244, %v1244
    %v1263 = vadd.f32 %v1259, %v1261
    %v1264 = vrot.slane %v1263, 4
    %v1265 = vadd.f32 %v1263, %v1264
    %v1266 = vrot.slane %v1265, 2
    %v1267 = vadd.f32 %v1265, %v1266
    %v1268 = vrot.slane %v1267, 1
    %v1269 = vadd.f32 %v1267, %v1268
    %v1270 = vadd.f32 %v1260, %v1262
    %v1271 = vrot.slane %v1270, 4
    %v1272 = vadd.f32 %v1270, %v1271
    %v1273 = vrot.slane %v1272, 2
    %v1274 = vadd.f32 %v1272, %v1273
    %v1275 = vrot.slane %v1274, 1
    %v1276 = vadd.f32 %v1274, %v1275
    %1277 = vmatprep.subr.mxu0 %v291
    %1278 = vmatpush1.msra.mxu0 %v290
    %1279 = vmatprep.subr.mxu0 %v293
    %1280 = vmatpush1.msra.mxu0 %v292
    %1281 = vmatprep.subr.mxu0 %v295
    %1282 = vmatpush1.msra.mxu0 %v294
    %1283 = vmatprep.subr.mxu0 %v297
    %1284 = vmatpush1.msra.mxu0 %v296
    %1285 = vmatprep.subr.mxu0 %v299
    %1286 = vmatpush1.msra.mxu0 %v298
    %1287 = vmatprep.subr.mxu0 %v301
    %1288 = vmatpush1.msra.mxu0 %v300
    %1289 = vmatprep.subr.mxu0 %v303
    %1290 = vmatpush1.msra.mxu0 %v302
    %1291 = vmatprep.subr.mxu0 %v305
    %1292 = vmatpush1.msra.mxu0 %v304
    %1293 = vmatprep.subr.mxu0 %v307
    %1294 = vmatpush1.msra.mxu0 %v306
    %1295 = vmatprep.subr.mxu0 %v309
    %1296 = vmatpush1.msra.mxu0 %v308
    %1297 = vmatprep.subr.mxu0 %v311
    %1298 = vmatpush1.msra.mxu0 %v310
    %1299 = vmatprep.subr.mxu0 %v313
    %1300 = vmatpush1.msra.mxu0 %v312
    %1301 = vmatprep.subr.mxu0 %v315
    %1302 = vmatpush1.msra.mxu0 %v314
    %1303 = vmatprep.subr.mxu0 %v317
    %1304 = vmatpush1.msra.mxu0 %v316
    %1305 = vmatprep.subr.mxu0 %v319
    %1306 = vmatpush1.msra.mxu0 %v318
    %1307 = vmatprep.subr.mxu0 %v321
    %1308 = vmatpush1.msra.mxu0 %v320
    %1309 = vmatprep.subr.mxu0 %v323
    %1310 = vmatpush1.msra.mxu0 %v322
    %1311 = vmatprep.subr.mxu0 %v325
    %1312 = vmatpush1.msra.mxu0 %v324
    %1313 = vmatprep.subr.mxu0 %v327
    %1314 = vmatpush1.msra.mxu0 %v326
    %1315 = vmatprep.subr.mxu0 %v329
    %1316 = vmatpush1.msra.mxu0 %v328
    %1317 = vmatprep.subr.mxu0 %v331
    %1318 = vmatpush1.msra.mxu0 %v330
    %1319 = vmatprep.subr.mxu0 %v333
    %1320 = vmatpush1.msra.mxu0 %v332
    %1321 = vmatprep.subr.mxu0 %v335
    %1322 = vmatpush1.msra.mxu0 %v334
    %1323 = vmatprep.subr.mxu0 %v337
    %1324 = vmatpush1.msra.mxu0 %v336
    %1325 = vmatprep.subr.mxu0 %v339
    %1326 = vmatpush1.msra.mxu0 %v338
    %1327 = vmatprep.subr.mxu0 %v341
    %1328 = vmatpush1.msra.mxu0 %v340
    %1329 = vmatprep.subr.mxu0 %v343
    %1330 = vmatpush1.msra.mxu0 %v342
    %1331 = vmatprep.subr.mxu0 %v345
    %1332 = vmatpush1.msra.mxu0 %v344
    %1333 = vmatprep.subr.mxu0 %v347
    %1334 = vmatpush1.msra.mxu0 %v346
    %1335 = vmatprep.subr.mxu0 %v349
    %1336 = vmatpush1.msra.mxu0 %v348
    %1337 = vmatprep.subr.mxu0 %v351
    %1338 = vmatpush1.msra.mxu0 %v350
    %1339 = vmatprep.subr.mxu0 %v353
    %1340 = vmatpush1.msra.mxu0 %v352
    %1341 = vmatprep.mubr.f32.mxu0 %v1258
    %1342 = vmatmul.mubr.f32.gmra.mrb[0].mxu0 %v1251
    %v1343 = vpop.f32.mrb[0].mxu0
    %v1344 = vadd.f32 0.0, %v1343
    %v1345 = vpop.f32.mrb[0].mxu0
    %v1346 = vadd.f32 0.0, %v1345
    %1347 = vdwg.mxu0
    %v1348 = vmul.f32 %v1344, 0.0078125
    %v1349 = vmul.f32 %v1346, 0.0078125
    %1350 = vmatprep.subr.mxu0 %v291
    %1351 = vmatpush1.msra.mxu0 %v290
    %1352 = vmatprep.subr.mxu0 %v293
    %1353 = vmatpush1.msra.mxu0 %v292
    %1354 = vmatprep.subr.mxu0 %v295
    %1355 = vmatpush1.msra.mxu0 %v294
    %1356 = vmatprep.subr.mxu0 %v297
    %1357 = vmatpush1.msra.mxu0 %v296
    %1358 = vmatprep.subr.mxu0 %v299
    %1359 = vmatpush1.msra.mxu0 %v298
    %1360 = vmatprep.subr.mxu0 %v301
    %1361 = vmatpush1.msra.mxu0 %v300
    %1362 = vmatprep.subr.mxu0 %v303
    %1363 = vmatpush1.msra.mxu0 %v302
    %1364 = vmatprep.subr.mxu0 %v305
    %1365 = vmatpush1.msra.mxu0 %v304
    %1366 = vmatprep.subr.mxu0 %v307
    %1367 = vmatpush1.msra.mxu0 %v306
    %1368 = vmatprep.subr.mxu0 %v309
    %1369 = vmatpush1.msra.mxu0 %v308
    %1370 = vmatprep.subr.mxu0 %v311
    %1371 = vmatpush1.msra.mxu0 %v310
    %1372 = vmatprep.subr.mxu0 %v313
    %1373 = vmatpush1.msra.mxu0 %v312
    %1374 = vmatprep.subr.mxu0 %v315
    %1375 = vmatpush1.msra.mxu0 %v314
    %1376 = vmatprep.subr.mxu0 %v317
    %1377 = vmatpush1.msra.mxu0 %v316
    %1378 = vmatprep.subr.mxu0 %v319
    %1379 = vmatpush1.msra.mxu0 %v318
    %1380 = vmatprep.subr.mxu0 %v321
    %1381 = vmatpush1.msra.mxu0 %v320
    %1382 = vmatprep.subr.mxu0 %v323
    %1383 = vmatpush1.msra.mxu0 %v322
    %1384 = vmatprep.subr.mxu0 %v325
    %1385 = vmatpush1.msra.mxu0 %v324
    %1386 = vmatprep.subr.mxu0 %v327
    %1387 = vmatpush1.msra.mxu0 %v326
    %1388 = vmatprep.subr.mxu0 %v329
    %1389 = vmatpush1.msra.mxu0 %v328
    %1390 = vmatprep.subr.mxu0 %v331
    %1391 = vmatpush1.msra.mxu0 %v330
    %1392 = vmatprep.subr.mxu0 %v333
    %1393 = vmatpush1.msra.mxu0 %v332
    %1394 = vmatprep.subr.mxu0 %v335
    %1395 = vmatpush1.msra.mxu0 %v334
    %1396 = vmatprep.subr.mxu0 %v337
    %1397 = vmatpush1.msra.mxu0 %v336
    %1398 = vmatprep.subr.mxu0 %v339
    %1399 = vmatpush1.msra.mxu0 %v338
    %1400 = vmatprep.subr.mxu0 %v341
    %1401 = vmatpush1.msra.mxu0 %v340
    %1402 = vmatprep.subr.mxu0 %v343
    %1403 = vmatpush1.msra.mxu0 %v342
    %1404 = vmatprep.subr.mxu0 %v345
    %1405 = vmatpush1.msra.mxu0 %v344
    %1406 = vmatprep.subr.mxu0 %v347
    %1407 = vmatpush1.msra.mxu0 %v346
    %1408 = vmatprep.subr.mxu0 %v349
    %1409 = vmatpush1.msra.mxu0 %v348
    %1410 = vmatprep.subr.mxu0 %v351
    %1411 = vmatpush1.msra.mxu0 %v350
    %1412 = vmatprep.subr.mxu0 %v353
    %1413 = vmatpush1.msra.mxu0 %v352
    %1414 = vmatprep.mubr.f32.mxu0 %v1276
    %1415 = vmatmul.mubr.f32.gmra.mrb[0].mxu0 %v1269
    %v1416 = vpop.f32.mrb[0].mxu0
    %v1417 = vadd.f32 0.0, %v1416
    %v1418 = vpop.f32.mrb[0].mxu0
    %v1419 = vadd.f32 0.0, %v1418
    %1420 = vdwg.mxu0
    %v1421 = vmul.f32 %v1417, 0.0078125
    %v1422 = vmul.f32 %v1419, 0.0078125
    %v1423 = vmul.f32 %v1348, %v1348
    %v1424 = vmul.f32 %v1349, %v1349
    %v1425 = vsub.f32 %v1421, %v1423
    %v1426 = vsub.f32 %v1422, %v1424
    %v1427 = vmax.f32 %v1425, 0.0
    %v1428 = vmax.f32 %v1426, 0.0
    %v1429 = vadd.f32 %v1427, 1e-05
    %v1430 = vadd.f32 %v1428, 1e-05
    %v1431 = vrsqrt.pop %v1429
    %v1432 = vrsqrt.pop %v1430
    %v1433 = vlaneseq
    %v1434 = vshrl.u32 %v1433, 7
    %v1435 = vsub.s32 0, %v1434
    %v1436 = vrot.slane %v1348, %v1435
    %v1437 = vlaneseq
    %v1438 = vshrl.u32 %v1437, 7
    %v1439 = vsub.s32 0, %v1438
    %v1440 = vrot.slane %v1349, %v1439
    %v1441 = vsub.f32 %v1241, %v1436
    %v1442 = vsub.f32 %v1242, %v1440
    %v1443 = vsub.f32 %v1243, %v1436
    %v1444 = vsub.f32 %v1244, %v1440
    %v1445 = vld [vmem:[%s7] sm:$0x3]
    %v1447 = vlaneseq
    %v1448 = vshrl.u32 %v1447, 7
    %v1449 = vsub.s32 0, %v1448
    %v1450 = vrot.slane %v1445, %v1449
    %v1451 = vlaneseq
    %v1452 = vshrl.u32 %v1451, 7
    %v1453 = vsub.s32 1, %v1452
    %v1454 = vrot.slane %v1445, %v1453
    %v1457 = vmul.f32 %v1431, %v1450
    %v1458 = vmul.f32 %v1432, %v1454
    %v1459 = vlaneseq
    %v1460 = vshrl.u32 %v1459, 7
    %v1461 = vsub.s32 0, %v1460
    %v1462 = vrot.slane %v1457, %v1461
    %v1463 = vlaneseq
    %v1464 = vshrl.u32 %v1463, 7
    %v1465 = vsub.s32 0, %v1464
    %v1466 = vrot.slane %v1458, %v1465
    %v1467 = vmul.f32 %v1441, %v1462
    %v1468 = vmul.f32 %v1442, %v1466
    %v1469 = vmul.f32 %v1443, %v1462
    %v1470 = vmul.f32 %v1444, %v1466
    %v1471 = vld [vmem:[%s8] sm:$0x3]
    %v1473 = vlaneseq
    %v1474 = vshrl.u32 %v1473, 7
    %v1475 = vsub.s32 0, %v1474
    %v1476 = vrot.slane %v1471, %v1475
    %v1477 = vlaneseq
    %v1478 = vshrl.u32 %v1477, 7
    %v1479 = vsub.s32 1, %v1478
    %v1480 = vrot.slane %v1471, %v1479
    %v1483 = vadd.f32 %v1467, %v1476
    %v1484 = vadd.f32 %v1468, %v1480
    %v1485 = vadd.f32 %v1469, %v1476
    %v1486 = vadd.f32 %v1470, %v1480
    %vm1487 = vcmp.gt.f32.partialorder %v1483, 0.0
    %vm1488 = vcmp.gt.f32.partialorder %v1484, 0.0
    %vm1489 = vcmp.gt.f32.partialorder %v1485, 0.0
    %vm1490 = vcmp.gt.f32.partialorder %v1486, 0.0
    %v1491 = vmul.f32 %v768, %v1483
    %v1492 = vmul.f32 %v768, %v1484
    %v1493 = vmul.f32 %v768, %v1485
    %v1494 = vmul.f32 %v768, %v1486
    %v1495 = vsel %vm1487, %v1483, %v1491
    %v1496 = vsel %vm1488, %v1484, %v1492
    %v1497 = vsel %vm1489, %v1485, %v1493
    %v1498 = vsel %vm1490, %v1486, %v1494
    %v1499 = vpack.c.bf16 %v1497, %v1495
    %v1500 = vpack.c.bf16 %v1498, %v1496
    %v1501 = vld [vmem:[#allocation9] sm:$0xff]
    %v1502 = vld [vmem:[#allocation9 + $0x8] sm:$0xff]
    %v1503 = vld [vmem:[#allocation9 + $0x10] sm:$0xff]
    %v1504 = vld [vmem:[#allocation9 + $0x18] sm:$0xff]
    %v1505 = vld [vmem:[#allocation9 + $0x20] sm:$0xff]
    %v1506 = vld [vmem:[#allocation9 + $0x28] sm:$0xff]
    %v1507 = vld [vmem:[#allocation9 + $0x30] sm:$0xff]
    %v1508 = vld [vmem:[#allocation9 + $0x38] sm:$0xff]
    %v1509 = vld [vmem:[#allocation9 + $0x40] sm:$0xff]
    %v1510 = vld [vmem:[#allocation9 + $0x48] sm:$0xff]
    %v1511 = vld [vmem:[#allocation9 + $0x50] sm:$0xff]
    %v1512 = vld [vmem:[#allocation9 + $0x58] sm:$0xff]
    %v1513 = vld [vmem:[#allocation9 + $0x60] sm:$0xff]
    %v1514 = vld [vmem:[#allocation9 + $0x68] sm:$0xff]
    %v1515 = vld [vmem:[#allocation9 + $0x70] sm:$0xff]
    %v1516 = vld [vmem:[#allocation9 + $0x78] sm:$0xff]
    %v1517 = vld [vmem:[#allocation9 + $0x80] sm:$0xff]
    %v1518 = vld [vmem:[#allocation9 + $0x88] sm:$0xff]
    %v1519 = vld [vmem:[#allocation9 + $0x90] sm:$0xff]
    %v1520 = vld [vmem:[#allocation9 + $0x98] sm:$0xff]
    %v1521 = vld [vmem:[#allocation9 + $0xa0] sm:$0xff]
    %v1522 = vld [vmem:[#allocation9 + $0xa8] sm:$0xff]
    %v1523 = vld [vmem:[#allocation9 + $0xb0] sm:$0xff]
    %v1524 = vld [vmem:[#allocation9 + $0xb8] sm:$0xff]
    %v1525 = vld [vmem:[#allocation9 + $0xc0] sm:$0xff]
    %v1526 = vld [vmem:[#allocation9 + $0xc8] sm:$0xff]
    %v1527 = vld [vmem:[#allocation9 + $0xd0] sm:$0xff]
    %v1528 = vld [vmem:[#allocation9 + $0xd8] sm:$0xff]
    %v1529 = vld [vmem:[#allocation9 + $0xe0] sm:$0xff]
    %v1530 = vld [vmem:[#allocation9 + $0xe8] sm:$0xff]
    %v1531 = vld [vmem:[#allocation9 + $0xf0] sm:$0xff]
    %v1532 = vld [vmem:[#allocation9 + $0xf8] sm:$0xff]
    %v1565 = vunpack.c.l.b16 %v1501
    %v1566 = vunpack.c.h.b16 %v1501
    %v1567 = vunpack.c.l.b16 %v1502
    %v1568 = vunpack.c.h.b16 %v1502
    %v1569 = vunpack.c.l.b16 %v1503
    %v1570 = vunpack.c.h.b16 %v1503
    %v1571 = vunpack.c.l.b16 %v1504
    %v1572 = vunpack.c.h.b16 %v1504
    %v1573 = vunpack.c.l.b16 %v1505
    %v1574 = vunpack.c.h.b16 %v1505
    %v1575 = vunpack.c.l.b16 %v1506
    %v1576 = vunpack.c.h.b16 %v1506
    %v1577 = vunpack.c.l.b16 %v1507
    %v1578 = vunpack.c.h.b16 %v1507
    %v1579 = vunpack.c.l.b16 %v1508
    %v1580 = vunpack.c.h.b16 %v1508
    %v1581 = vunpack.c.l.b16 %v1509
    %v1582 = vunpack.c.h.b16 %v1509
    %v1583 = vunpack.c.l.b16 %v1510
    %v1584 = vunpack.c.h.b16 %v1510
    %v1585 = vunpack.c.l.b16 %v1511
    %v1586 = vunpack.c.h.b16 %v1511
    %v1587 = vunpack.c.l.b16 %v1512
    %v1588 = vunpack.c.h.b16 %v1512
    %v1589 = vunpack.c.l.b16 %v1513
    %v1590 = vunpack.c.h.b16 %v1513
    %v1591 = vunpack.c.l.b16 %v1514
    %v1592 = vunpack.c.h.b16 %v1514
    %v1593 = vunpack.c.l.b16 %v1515
    %v1594 = vunpack.c.h.b16 %v1515
    %v1595 = vunpack.c.l.b16 %v1516
    %v1596 = vunpack.c.h.b16 %v1516
    %v1597 = vunpack.c.l.b16 %v1517
    %v1598 = vunpack.c.h.b16 %v1517
    %v1599 = vunpack.c.l.b16 %v1518
    %v1600 = vunpack.c.h.b16 %v1518
    %v1601 = vunpack.c.l.b16 %v1519
    %v1602 = vunpack.c.h.b16 %v1519
    %v1603 = vunpack.c.l.b16 %v1520
    %v1604 = vunpack.c.h.b16 %v1520
    %v1605 = vunpack.c.l.b16 %v1521
    %v1606 = vunpack.c.h.b16 %v1521
    %v1607 = vunpack.c.l.b16 %v1522
    %v1608 = vunpack.c.h.b16 %v1522
    %v1609 = vunpack.c.l.b16 %v1523
    %v1610 = vunpack.c.h.b16 %v1523
    %v1611 = vunpack.c.l.b16 %v1524
    %v1612 = vunpack.c.h.b16 %v1524
    %v1613 = vunpack.c.l.b16 %v1525
    %v1614 = vunpack.c.h.b16 %v1525
    %v1615 = vunpack.c.l.b16 %v1526
    %v1616 = vunpack.c.h.b16 %v1526
    %v1617 = vunpack.c.l.b16 %v1527
    %v1618 = vunpack.c.h.b16 %v1527
    %v1619 = vunpack.c.l.b16 %v1528
    %v1620 = vunpack.c.h.b16 %v1528
    %v1621 = vunpack.c.l.b16 %v1529
    %v1622 = vunpack.c.h.b16 %v1529
    %v1623 = vunpack.c.l.b16 %v1530
    %v1624 = vunpack.c.h.b16 %v1530
    %v1625 = vunpack.c.l.b16 %v1531
    %v1626 = vunpack.c.h.b16 %v1531
    %v1627 = vunpack.c.l.b16 %v1532
    %v1628 = vunpack.c.h.b16 %v1532
    %v1629 = vpack.c.b16 %v1567, %v1565
    %v1630 = vpack.c.b16 %v1568, %v1566
    %v1631 = vpack.c.b16 %v1571, %v1569
    %v1632 = vpack.c.b16 %v1572, %v1570
    %v1633 = vpack.c.b16 %v1575, %v1573
    %v1634 = vpack.c.b16 %v1576, %v1574
    %v1635 = vpack.c.b16 %v1579, %v1577
    %v1636 = vpack.c.b16 %v1580, %v1578
    %v1637 = vpack.c.b16 %v1583, %v1581
    %v1638 = vpack.c.b16 %v1584, %v1582
    %v1639 = vpack.c.b16 %v1587, %v1585
    %v1640 = vpack.c.b16 %v1588, %v1586
    %v1641 = vpack.c.b16 %v1591, %v1589
    %v1642 = vpack.c.b16 %v1592, %v1590
    %v1643 = vpack.c.b16 %v1595, %v1593
    %v1644 = vpack.c.b16 %v1596, %v1594
    %v1645 = vpack.c.b16 %v1599, %v1597
    %v1646 = vpack.c.b16 %v1600, %v1598
    %v1647 = vpack.c.b16 %v1603, %v1601
    %v1648 = vpack.c.b16 %v1604, %v1602
    %v1649 = vpack.c.b16 %v1607, %v1605
    %v1650 = vpack.c.b16 %v1608, %v1606
    %v1651 = vpack.c.b16 %v1611, %v1609
    %v1652 = vpack.c.b16 %v1612, %v1610
    %v1653 = vpack.c.b16 %v1615, %v1613
    %v1654 = vpack.c.b16 %v1616, %v1614
    %v1655 = vpack.c.b16 %v1619, %v1617
    %v1656 = vpack.c.b16 %v1620, %v1618
    %v1657 = vpack.c.b16 %v1623, %v1621
    %v1658 = vpack.c.b16 %v1624, %v1622
    %v1659 = vpack.c.b16 %v1627, %v1625
    %v1660 = vpack.c.b16 %v1628, %v1626
    %1693 = vmatprep.subr.bf16.mxu0 %v1630
    %1694 = vmatpush1.bf16.msra.mxu0 %v1629
    %1695 = vmatprep.subr.bf16.mxu0 %v1632
    %1696 = vmatpush1.bf16.msra.mxu0 %v1631
    %1697 = vmatprep.subr.bf16.mxu0 %v1634
    %1698 = vmatpush1.bf16.msra.mxu0 %v1633
    %1699 = vmatprep.subr.bf16.mxu0 %v1636
    %1700 = vmatpush1.bf16.msra.mxu0 %v1635
    %1701 = vmatprep.subr.bf16.mxu0 %v1638
    %1702 = vmatpush1.bf16.msra.mxu0 %v1637
    %1703 = vmatprep.subr.bf16.mxu0 %v1640
    %1704 = vmatpush1.bf16.msra.mxu0 %v1639
    %1705 = vmatprep.subr.bf16.mxu0 %v1642
    %1706 = vmatpush1.bf16.msra.mxu0 %v1641
    %1707 = vmatprep.subr.bf16.mxu0 %v1644
    %1708 = vmatpush1.bf16.msra.mxu0 %v1643
    %1709 = vmatprep.subr.bf16.mxu0 %v1646
    %1710 = vmatpush1.bf16.msra.mxu0 %v1645
    %1711 = vmatprep.subr.bf16.mxu0 %v1648
    %1712 = vmatpush1.bf16.msra.mxu0 %v1647
    %1713 = vmatprep.subr.bf16.mxu0 %v1650
    %1714 = vmatpush1.bf16.msra.mxu0 %v1649
    %1715 = vmatprep.subr.bf16.mxu0 %v1652
    %1716 = vmatpush1.bf16.msra.mxu0 %v1651
    %1717 = vmatprep.subr.bf16.mxu0 %v1654
    %1718 = vmatpush1.bf16.msra.mxu0 %v1653
    %1719 = vmatprep.subr.bf16.mxu0 %v1656
    %1720 = vmatpush1.bf16.msra.mxu0 %v1655
    %1721 = vmatprep.subr.bf16.mxu0 %v1658
    %1722 = vmatpush1.bf16.msra.mxu0 %v1657
    %1723 = vmatprep.subr.bf16.mxu0 %v1660
    %1724 = vmatpush1.bf16.msra.mxu0 %v1659
    %1725 = vmatprep.mubr.bf16.mxu0 %v1500
    %1726 = vmatmul.mubr.bf16.gmra.mrb[0].mxu0 %v1499
    %v1727 = vpop.f32.mrb[0].mxu0
    %v1728 = vadd.f32 0.0, %v1727
    %v1729 = vpop.f32.mrb[0].mxu0
    %v1730 = vadd.f32 0.0, %v1729
    %v1731 = vpop.f32.mrb[0].mxu0
    %v1732 = vadd.f32 0.0, %v1731
    %v1733 = vpop.f32.mrb[0].mxu0
    %v1734 = vadd.f32 0.0, %v1733
    %1735 = vdwg.mxu0
    %s1736 = scalar_lea.vmem [#allocation9], 256
    %v1737 = vld [vmem:[%s1736] sm:$0xff]
    %v1738 = vld [vmem:[%s1736 + $0x8] sm:$0xff]
    %v1739 = vld [vmem:[%s1736 + $0x10] sm:$0xff]
    %v1740 = vld [vmem:[%s1736 + $0x18] sm:$0xff]
    %v1741 = vld [vmem:[%s1736 + $0x20] sm:$0xff]
    %v1742 = vld [vmem:[%s1736 + $0x28] sm:$0xff]
    %v1743 = vld [vmem:[%s1736 + $0x30] sm:$0xff]
    %v1744 = vld [vmem:[%s1736 + $0x38] sm:$0xff]
    %v1745 = vld [vmem:[%s1736 + $0x40] sm:$0xff]
    %v1746 = vld [vmem:[%s1736 + $0x48] sm:$0xff]
    %v1747 = vld [vmem:[%s1736 + $0x50] sm:$0xff]
    %v1748 = vld [vmem:[%s1736 + $0x58] sm:$0xff]
    %v1749 = vld [vmem:[%s1736 + $0x60] sm:$0xff]
    %v1750 = vld [vmem:[%s1736 + $0x68] sm:$0xff]
    %v1751 = vld [vmem:[%s1736 + $0x70] sm:$0xff]
    %v1752 = vld [vmem:[%s1736 + $0x78] sm:$0xff]
    %v1753 = vld [vmem:[%s1736 + $0x80] sm:$0xff]
    %v1754 = vld [vmem:[%s1736 + $0x88] sm:$0xff]
    %v1755 = vld [vmem:[%s1736 + $0x90] sm:$0xff]
    %v1756 = vld [vmem:[%s1736 + $0x98] sm:$0xff]
    %v1757 = vld [vmem:[%s1736 + $0xa0] sm:$0xff]
    %v1758 = vld [vmem:[%s1736 + $0xa8] sm:$0xff]
    %v1759 = vld [vmem:[%s1736 + $0xb0] sm:$0xff]
    %v1760 = vld [vmem:[%s1736 + $0xb8] sm:$0xff]
    %v1761 = vld [vmem:[%s1736 + $0xc0] sm:$0xff]
    %v1762 = vld [vmem:[%s1736 + $0xc8] sm:$0xff]
    %v1763 = vld [vmem:[%s1736 + $0xd0] sm:$0xff]
    %v1764 = vld [vmem:[%s1736 + $0xd8] sm:$0xff]
    %v1765 = vld [vmem:[%s1736 + $0xe0] sm:$0xff]
    %v1766 = vld [vmem:[%s1736 + $0xe8] sm:$0xff]
    %v1767 = vld [vmem:[%s1736 + $0xf0] sm:$0xff]
    %v1768 = vld [vmem:[%s1736 + $0xf8] sm:$0xff]
    %s1769 = scalar_lea.vmem [#allocation9], 512
    %v1770 = vld [vmem:[%s1769] sm:$0xff]
    %v1771 = vld [vmem:[%s1769 + $0x8] sm:$0xff]
    %v1772 = vld [vmem:[%s1769 + $0x10] sm:$0xff]
    %v1773 = vld [vmem:[%s1769 + $0x18] sm:$0xff]
    %v1774 = vld [vmem:[%s1769 + $0x20] sm:$0xff]
    %v1775 = vld [vmem:[%s1769 + $0x28] sm:$0xff]
    %v1776 = vld [vmem:[%s1769 + $0x30] sm:$0xff]
    %v1777 = vld [vmem:[%s1769 + $0x38] sm:$0xff]
    %v1778 = vld [vmem:[%s1769 + $0x40] sm:$0xff]
    %v1779 = vld [vmem:[%s1769 + $0x48] sm:$0xff]
    %v1780 = vld [vmem:[%s1769 + $0x50] sm:$0xff]
    %v1781 = vld [vmem:[%s1769 + $0x58] sm:$0xff]
    %v1782 = vld [vmem:[%s1769 + $0x60] sm:$0xff]
    %v1783 = vld [vmem:[%s1769 + $0x68] sm:$0xff]
    %v1784 = vld [vmem:[%s1769 + $0x70] sm:$0xff]
    %v1785 = vld [vmem:[%s1769 + $0x78] sm:$0xff]
    %v1786 = vld [vmem:[%s1769 + $0x80] sm:$0xff]
    %v1787 = vld [vmem:[%s1769 + $0x88] sm:$0xff]
    %v1788 = vld [vmem:[%s1769 + $0x90] sm:$0xff]
    %v1789 = vld [vmem:[%s1769 + $0x98] sm:$0xff]
    %v1790 = vld [vmem:[%s1769 + $0xa0] sm:$0xff]
    %v1791 = vld [vmem:[%s1769 + $0xa8] sm:$0xff]
    %v1792 = vld [vmem:[%s1769 + $0xb0] sm:$0xff]
    %v1793 = vld [vmem:[%s1769 + $0xb8] sm:$0xff]
    %v1794 = vld [vmem:[%s1769 + $0xc0] sm:$0xff]
    %v1795 = vld [vmem:[%s1769 + $0xc8] sm:$0xff]
    %v1796 = vld [vmem:[%s1769 + $0xd0] sm:$0xff]
    %v1797 = vld [vmem:[%s1769 + $0xd8] sm:$0xff]
    %v1798 = vld [vmem:[%s1769 + $0xe0] sm:$0xff]
    %v1799 = vld [vmem:[%s1769 + $0xe8] sm:$0xff]
    %v1800 = vld [vmem:[%s1769 + $0xf0] sm:$0xff]
    %v1801 = vld [vmem:[%s1769 + $0xf8] sm:$0xff]
    %v1834 = vunpack.c.l.b16 %v1770
    %v1835 = vunpack.c.h.b16 %v1770
    %v1836 = vunpack.c.l.b16 %v1771
    %v1837 = vunpack.c.h.b16 %v1771
    %v1838 = vunpack.c.l.b16 %v1772
    %v1839 = vunpack.c.h.b16 %v1772
    %v1840 = vunpack.c.l.b16 %v1773
    %v1841 = vunpack.c.h.b16 %v1773
    %v1842 = vunpack.c.l.b16 %v1774
    %v1843 = vunpack.c.h.b16 %v1774
    %v1844 = vunpack.c.l.b16 %v1775
    %v1845 = vunpack.c.h.b16 %v1775
    %v1846 = vunpack.c.l.b16 %v1776
    %v1847 = vunpack.c.h.b16 %v1776
    %v1848 = vunpack.c.l.b16 %v1777
    %v1849 = vunpack.c.h.b16 %v1777
    %v1850 = vunpack.c.l.b16 %v1778
    %v1851 = vunpack.c.h.b16 %v1778
    %v1852 = vunpack.c.l.b16 %v1779
    %v1853 = vunpack.c.h.b16 %v1779
    %v1854 = vunpack.c.l.b16 %v1780
    %v1855 = vunpack.c.h.b16 %v1780
    %v1856 = vunpack.c.l.b16 %v1781
    %v1857 = vunpack.c.h.b16 %v1781
    %v1858 = vunpack.c.l.b16 %v1782
    %v1859 = vunpack.c.h.b16 %v1782
    %v1860 = vunpack.c.l.b16 %v1783
    %v1861 = vunpack.c.h.b16 %v1783
    %v1862 = vunpack.c.l.b16 %v1784
    %v1863 = vunpack.c.h.b16 %v1784
    %v1864 = vunpack.c.l.b16 %v1785
    %v1865 = vunpack.c.h.b16 %v1785
    %v1866 = vunpack.c.l.b16 %v1786
    %v1867 = vunpack.c.h.b16 %v1786
    %v1868 = vunpack.c.l.b16 %v1787
    %v1869 = vunpack.c.h.b16 %v1787
    %v1870 = vunpack.c.l.b16 %v1788
    %v1871 = vunpack.c.h.b16 %v1788
    %v1872 = vunpack.c.l.b16 %v1789
    %v1873 = vunpack.c.h.b16 %v1789
    %v1874 = vunpack.c.l.b16 %v1790
    %v1875 = vunpack.c.h.b16 %v1790
    %v1876 = vunpack.c.l.b16 %v1791
    %v1877 = vunpack.c.h.b16 %v1791
    %v1878 = vunpack.c.l.b16 %v1792
    %v1879 = vunpack.c.h.b16 %v1792
    %v1880 = vunpack.c.l.b16 %v1793
    %v1881 = vunpack.c.h.b16 %v1793
    %v1882 = vunpack.c.l.b16 %v1794
    %v1883 = vunpack.c.h.b16 %v1794
    %v1884 = vunpack.c.l.b16 %v1795
    %v1885 = vunpack.c.h.b16 %v1795
    %v1886 = vunpack.c.l.b16 %v1796
    %v1887 = vunpack.c.h.b16 %v1796
    %v1888 = vunpack.c.l.b16 %v1797
    %v1889 = vunpack.c.h.b16 %v1797
    %v1890 = vunpack.c.l.b16 %v1798
    %v1891 = vunpack.c.h.b16 %v1798
    %v1892 = vunpack.c.l.b16 %v1799
    %v1893 = vunpack.c.h.b16 %v1799
    %v1894 = vunpack.c.l.b16 %v1800
    %v1895 = vunpack.c.h.b16 %v1800
    %v1896 = vunpack.c.l.b16 %v1801
    %v1897 = vunpack.c.h.b16 %v1801
    %v1898 = vpack.c.b16 %v1836, %v1834
    %v1899 = vpack.c.b16 %v1837, %v1835
    %v1900 = vpack.c.b16 %v1840, %v1838
    %v1901 = vpack.c.b16 %v1841, %v1839
    %v1902 = vpack.c.b16 %v1844, %v1842
    %v1903 = vpack.c.b16 %v1845, %v1843
    %v1904 = vpack.c.b16 %v1848, %v1846
    %v1905 = vpack.c.b16 %v1849, %v1847
    %v1906 = vpack.c.b16 %v1852, %v1850
    %v1907 = vpack.c.b16 %v1853, %v1851
    %v1908 = vpack.c.b16 %v1856, %v1854
    %v1909 = vpack.c.b16 %v1857, %v1855
    %v1910 = vpack.c.b16 %v1860, %v1858
    %v1911 = vpack.c.b16 %v1861, %v1859
    %v1912 = vpack.c.b16 %v1864, %v1862
    %v1913 = vpack.c.b16 %v1865, %v1863
    %v1914 = vpack.c.b16 %v1868, %v1866
    %v1915 = vpack.c.b16 %v1869, %v1867
    %v1916 = vpack.c.b16 %v1872, %v1870
    %v1917 = vpack.c.b16 %v1873, %v1871
    %v1918 = vpack.c.b16 %v1876, %v1874
    %v1919 = vpack.c.b16 %v1877, %v1875
    %v1920 = vpack.c.b16 %v1880, %v1878
    %v1921 = vpack.c.b16 %v1881, %v1879
    %v1922 = vpack.c.b16 %v1884, %v1882
    %v1923 = vpack.c.b16 %v1885, %v1883
    %v1924 = vpack.c.b16 %v1888, %v1886
    %v1925 = vpack.c.b16 %v1889, %v1887
    %v1926 = vpack.c.b16 %v1892, %v1890
    %v1927 = vpack.c.b16 %v1893, %v1891
    %v1928 = vpack.c.b16 %v1896, %v1894
    %v1929 = vpack.c.b16 %v1897, %v1895
    %1962 = vmatprep.subr.bf16.mxu0 %v1899
    %1963 = vmatpush1.bf16.msra.mxu0 %v1898
    %1964 = vmatprep.subr.bf16.mxu0 %v1901
    %1965 = vmatpush1.bf16.msra.mxu0 %v1900
    %1966 = vmatprep.subr.bf16.mxu0 %v1903
    %1967 = vmatpush1.bf16.msra.mxu0 %v1902
    %1968 = vmatprep.subr.bf16.mxu0 %v1905
    %1969 = vmatpush1.bf16.msra.mxu0 %v1904
    %1970 = vmatprep.subr.bf16.mxu0 %v1907
    %1971 = vmatpush1.bf16.msra.mxu0 %v1906
    %1972 = vmatprep.subr.bf16.mxu0 %v1909
    %1973 = vmatpush1.bf16.msra.mxu0 %v1908
    %1974 = vmatprep.subr.bf16.mxu0 %v1911
    %1975 = vmatpush1.bf16.msra.mxu0 %v1910
    %1976 = vmatprep.subr.bf16.mxu0 %v1913
    %1977 = vmatpush1.bf16.msra.mxu0 %v1912
    %1978 = vmatprep.subr.bf16.mxu0 %v1915
    %1979 = vmatpush1.bf16.msra.mxu0 %v1914
    %1980 = vmatprep.subr.bf16.mxu0 %v1917
    %1981 = vmatpush1.bf16.msra.mxu0 %v1916
    %1982 = vmatprep.subr.bf16.mxu0 %v1919
    %1983 = vmatpush1.bf16.msra.mxu0 %v1918
    %1984 = vmatprep.subr.bf16.mxu0 %v1921
    %1985 = vmatpush1.bf16.msra.mxu0 %v1920
    %1986 = vmatprep.subr.bf16.mxu0 %v1923
    %1987 = vmatpush1.bf16.msra.mxu0 %v1922
    %1988 = vmatprep.subr.bf16.mxu0 %v1925
    %1989 = vmatpush1.bf16.msra.mxu0 %v1924
    %1990 = vmatprep.subr.bf16.mxu0 %v1927
    %1991 = vmatpush1.bf16.msra.mxu0 %v1926
    %1992 = vmatprep.subr.bf16.mxu0 %v1929
    %1993 = vmatpush1.bf16.msra.mxu0 %v1928
    %1994 = vmatprep.mubr.bf16.mxu0 %v1500
    %1995 = vmatmul.mubr.bf16.gmra.mrb[0].mxu0 %v1499
    %v1996 = vpop.f32.mrb[0].mxu0
    %v1997 = vadd.f32 0.0, %v1996
    %v1998 = vpop.f32.mrb[0].mxu0
    %v1999 = vadd.f32 0.0, %v1998
    %v2000 = vpop.f32.mrb[0].mxu0
    %v2001 = vadd.f32 0.0, %v2000
    %v2002 = vpop.f32.mrb[0].mxu0
    %v2003 = vadd.f32 0.0, %v2002
    %2004 = vdwg.mxu0
    %v2005 = vrot.slane %v1728, 7
    %v2006 = vrot.slane %v1730, 7
    %v2007 = vrot.slane %v1732, 7
    %v2008 = vrot.slane %v1734, 7
    %v2009 = vsel %vm1076, %v2005, %v2007
    %v2010 = vsel %vm1076, %v2006, %v2008
    %v2011 = vsel %vm1076, %v2007, %v2005
    %v2012 = vsel %vm1076, %v2008, %v2006
    %v2013 = vmul.f32 %v2011, %v1084
    %v2014 = vmul.f32 %v2012, %v1084
    %v2015 = vmul.f32 %v2009, %v1089
    %v2016 = vmul.f32 %v2010, %v1089
    %v2017 = vrot.slane %v1997, 1
    %v2018 = vrot.slane %v1999, 1
    %v2019 = vrot.slane %v2001, 1
    %v2020 = vrot.slane %v2003, 1
    %v2021 = vsel %vm1099, %v2017, %v2019
    %v2022 = vsel %vm1099, %v2018, %v2020
    %v2023 = vsel %vm1099, %v2019, %v2017
    %v2024 = vsel %vm1099, %v2020, %v2018
    %v2025 = vmul.f32 %v2021, %v1107
    %v2026 = vmul.f32 %v2022, %v1107
    %v2027 = vmul.f32 %v2023, %v1112
    %v2028 = vmul.f32 %v2024, %v1112
    %v2061 = vunpack.c.l.b16 %v1737
    %v2062 = vunpack.c.h.b16 %v1737
    %v2063 = vunpack.c.l.b16 %v1738
    %v2064 = vunpack.c.h.b16 %v1738
    %v2065 = vunpack.c.l.b16 %v1739
    %v2066 = vunpack.c.h.b16 %v1739
    %v2067 = vunpack.c.l.b16 %v1740
    %v2068 = vunpack.c.h.b16 %v1740
    %v2069 = vunpack.c.l.b16 %v1741
    %v2070 = vunpack.c.h.b16 %v1741
    %v2071 = vunpack.c.l.b16 %v1742
    %v2072 = vunpack.c.h.b16 %v1742
    %v2073 = vunpack.c.l.b16 %v1743
    %v2074 = vunpack.c.h.b16 %v1743
    %v2075 = vunpack.c.l.b16 %v1744
    %v2076 = vunpack.c.h.b16 %v1744
    %v2077 = vunpack.c.l.b16 %v1745
    %v2078 = vunpack.c.h.b16 %v1745
    %v2079 = vunpack.c.l.b16 %v1746
    %v2080 = vunpack.c.h.b16 %v1746
    %v2081 = vunpack.c.l.b16 %v1747
    %v2082 = vunpack.c.h.b16 %v1747
    %v2083 = vunpack.c.l.b16 %v1748
    %v2084 = vunpack.c.h.b16 %v1748
    %v2085 = vunpack.c.l.b16 %v1749
    %v2086 = vunpack.c.h.b16 %v1749
    %v2087 = vunpack.c.l.b16 %v1750
    %v2088 = vunpack.c.h.b16 %v1750
    %v2089 = vunpack.c.l.b16 %v1751
    %v2090 = vunpack.c.h.b16 %v1751
    %v2091 = vunpack.c.l.b16 %v1752
    %v2092 = vunpack.c.h.b16 %v1752
    %v2093 = vunpack.c.l.b16 %v1753
    %v2094 = vunpack.c.h.b16 %v1753
    %v2095 = vunpack.c.l.b16 %v1754
    %v2096 = vunpack.c.h.b16 %v1754
    %v2097 = vunpack.c.l.b16 %v1755
    %v2098 = vunpack.c.h.b16 %v1755
    %v2099 = vunpack.c.l.b16 %v1756
    %v2100 = vunpack.c.h.b16 %v1756
    %v2101 = vunpack.c.l.b16 %v1757
    %v2102 = vunpack.c.h.b16 %v1757
    %v2103 = vunpack.c.l.b16 %v1758
    %v2104 = vunpack.c.h.b16 %v1758
    %v2105 = vunpack.c.l.b16 %v1759
    %v2106 = vunpack.c.h.b16 %v1759
    %v2107 = vunpack.c.l.b16 %v1760
    %v2108 = vunpack.c.h.b16 %v1760
    %v2109 = vunpack.c.l.b16 %v1761
    %v2110 = vunpack.c.h.b16 %v1761
    %v2111 = vunpack.c.l.b16 %v1762
    %v2112 = vunpack.c.h.b16 %v1762
    %v2113 = vunpack.c.l.b16 %v1763
    %v2114 = vunpack.c.h.b16 %v1763
    %v2115 = vunpack.c.l.b16 %v1764
    %v2116 = vunpack.c.h.b16 %v1764
    %v2117 = vunpack.c.l.b16 %v1765
    %v2118 = vunpack.c.h.b16 %v1765
    %v2119 = vunpack.c.l.b16 %v1766
    %v2120 = vunpack.c.h.b16 %v1766
    %v2121 = vunpack.c.l.b16 %v1767
    %v2122 = vunpack.c.h.b16 %v1767
    %v2123 = vunpack.c.l.b16 %v1768
    %v2124 = vunpack.c.h.b16 %v1768
    %v2125 = vpack.c.b16 %v2063, %v2061
    %v2126 = vpack.c.b16 %v2064, %v2062
    %v2127 = vpack.c.b16 %v2067, %v2065
    %v2128 = vpack.c.b16 %v2068, %v2066
    %v2129 = vpack.c.b16 %v2071, %v2069
    %v2130 = vpack.c.b16 %v2072, %v2070
    %v2131 = vpack.c.b16 %v2075, %v2073
    %v2132 = vpack.c.b16 %v2076, %v2074
    %v2133 = vpack.c.b16 %v2079, %v2077
    %v2134 = vpack.c.b16 %v2080, %v2078
    %v2135 = vpack.c.b16 %v2083, %v2081
    %v2136 = vpack.c.b16 %v2084, %v2082
    %v2137 = vpack.c.b16 %v2087, %v2085
    %v2138 = vpack.c.b16 %v2088, %v2086
    %v2139 = vpack.c.b16 %v2091, %v2089
    %v2140 = vpack.c.b16 %v2092, %v2090
    %v2141 = vpack.c.b16 %v2095, %v2093
    %v2142 = vpack.c.b16 %v2096, %v2094
    %v2143 = vpack.c.b16 %v2099, %v2097
    %v2144 = vpack.c.b16 %v2100, %v2098
    %v2145 = vpack.c.b16 %v2103, %v2101
    %v2146 = vpack.c.b16 %v2104, %v2102
    %v2147 = vpack.c.b16 %v2107, %v2105
    %v2148 = vpack.c.b16 %v2108, %v2106
    %v2149 = vpack.c.b16 %v2111, %v2109
    %v2150 = vpack.c.b16 %v2112, %v2110
    %v2151 = vpack.c.b16 %v2115, %v2113
    %v2152 = vpack.c.b16 %v2116, %v2114
    %v2153 = vpack.c.b16 %v2119, %v2117
    %v2154 = vpack.c.b16 %v2120, %v2118
    %v2155 = vpack.c.b16 %v2123, %v2121
    %v2156 = vpack.c.b16 %v2124, %v2122
    %2189 = vmatprep.subr.bf16.mxu0 %v2126
    %2190 = vmatpush1.bf16.msra.mxu0 %v2125
    %2191 = vmatprep.subr.bf16.mxu0 %v2128
    %2192 = vmatpush1.bf16.msra.mxu0 %v2127
    %2193 = vmatprep.subr.bf16.mxu0 %v2130
    %2194 = vmatpush1.bf16.msra.mxu0 %v2129
    %2195 = vmatprep.subr.bf16.mxu0 %v2132
    %2196 = vmatpush1.bf16.msra.mxu0 %v2131
    %2197 = vmatprep.subr.bf16.mxu0 %v2134
    %2198 = vmatpush1.bf16.msra.mxu0 %v2133
    %2199 = vmatprep.subr.bf16.mxu0 %v2136
    %2200 = vmatpush1.bf16.msra.mxu0 %v2135
    %2201 = vmatprep.subr.bf16.mxu0 %v2138
    %2202 = vmatpush1.bf16.msra.mxu0 %v2137
    %2203 = vmatprep.subr.bf16.mxu0 %v2140
    %2204 = vmatpush1.bf16.msra.mxu0 %v2139
    %2205 = vmatprep.subr.bf16.mxu0 %v2142
    %2206 = vmatpush1.bf16.msra.mxu0 %v2141
    %2207 = vmatprep.subr.bf16.mxu0 %v2144
    %2208 = vmatpush1.bf16.msra.mxu0 %v2143
    %2209 = vmatprep.subr.bf16.mxu0 %v2146
    %2210 = vmatpush1.bf16.msra.mxu0 %v2145
    %2211 = vmatprep.subr.bf16.mxu0 %v2148
    %2212 = vmatpush1.bf16.msra.mxu0 %v2147
    %2213 = vmatprep.subr.bf16.mxu0 %v2150
    %2214 = vmatpush1.bf16.msra.mxu0 %v2149
    %2215 = vmatprep.subr.bf16.mxu0 %v2152
    %2216 = vmatpush1.bf16.msra.mxu0 %v2151
    %2217 = vmatprep.subr.bf16.mxu0 %v2154
    %2218 = vmatpush1.bf16.msra.mxu0 %v2153
    %2219 = vmatprep.subr.bf16.mxu0 %v2156
    %2220 = vmatpush1.bf16.msra.mxu0 %v2155
    %2221 = vmatprep.mubr.bf16.mxu0 %v1500
    %2222 = vmatmul.mubr.bf16.gmra.mrb[0].mxu0 %v1499
    %v2223 = vpop.f32.mrb[0].mxu0
    %v2224 = vadd.f32 %v2013, %v2223
    %v2225 = vpop.f32.mrb[0].mxu0
    %v2226 = vadd.f32 %v2014, %v2225
    %v2227 = vpop.f32.mrb[0].mxu0
    %v2228 = vadd.f32 %v2015, %v2227
    %v2229 = vpop.f32.mrb[0].mxu0
    %v2230 = vadd.f32 %v2016, %v2229
    %2231 = vdwg.mxu0
    %v2232 = vadd.f32 %v2224, %v2025
    %v2233 = vadd.f32 %v2226, %v2026
    %v2234 = vadd.f32 %v2228, %v2027
    %v2235 = vadd.f32 %v2230, %v2028
    %v2236 = vrot.slane %v2232, 4
    %v2237 = vadd.f32 %v2232, %v2236
    %v2238 = vrot.slane %v2237, 2
    %v2239 = vadd.f32 %v2237, %v2238
    %v2240 = vrot.slane %v2239, 1
    %v2241 = vadd.f32 %v2239, %v2240
    %v2242 = vrot.slane %v2233, 4
    %v2243 = vadd.f32 %v2233, %v2242
    %v2244 = vrot.slane %v2243, 2
    %v2245 = vadd.f32 %v2243, %v2244
    %v2246 = vrot.slane %v2245, 1
    %v2247 = vadd.f32 %v2245, %v2246
    %v2248 = vrot.slane %v2234, 4
    %v2249 = vadd.f32 %v2234, %v2248
    %v2250 = vrot.slane %v2249, 2
    %v2251 = vadd.f32 %v2249, %v2250
    %v2252 = vrot.slane %v2251, 1
    %v2253 = vadd.f32 %v2251, %v2252
    %v2254 = vrot.slane %v2235, 4
    %v2255 = vadd.f32 %v2235, %v2254
    %v2256 = vrot.slane %v2255, 2
    %v2257 = vadd.f32 %v2255, %v2256
    %v2258 = vrot.slane %v2257, 1
    %v2259 = vadd.f32 %v2257, %v2258
    %v2260 = vld [vmem:[%s11] sm:$0xff]
    %v2261 = vld [vmem:[%s11 + $0x8] sm:$0xff]
    %v2262 = vld [vmem:[%s11 + $0x10] sm:$0xff]
    %v2263 = vld [vmem:[%s11 + $0x18] sm:$0xff]
    %v2264 = vld [vmem:[%s11 + $0x20] sm:$0xff]
    %v2265 = vld [vmem:[%s11 + $0x28] sm:$0xff]
    %v2266 = vld [vmem:[%s11 + $0x30] sm:$0xff]
    %v2267 = vld [vmem:[%s11 + $0x38] sm:$0xff]
    %v2268 = vld [vmem:[%s11 + $0x40] sm:$0xff]
    %v2269 = vld [vmem:[%s11 + $0x48] sm:$0xff]
    %v2270 = vld [vmem:[%s11 + $0x50] sm:$0xff]
    %v2271 = vld [vmem:[%s11 + $0x58] sm:$0xff]
    %v2272 = vld [vmem:[%s11 + $0x60] sm:$0xff]
    %v2273 = vld [vmem:[%s11 + $0x68] sm:$0xff]
    %v2274 = vld [vmem:[%s11 + $0x70] sm:$0xff]
    %v2275 = vld [vmem:[%s11 + $0x78] sm:$0xff]
    %v2276 = vld [vmem:[%s11 + $0x80] sm:$0xff]
    %v2277 = vld [vmem:[%s11 + $0x88] sm:$0xff]
    %v2278 = vld [vmem:[%s11 + $0x90] sm:$0xff]
    %v2279 = vld [vmem:[%s11 + $0x98] sm:$0xff]
    %v2280 = vld [vmem:[%s11 + $0xa0] sm:$0xff]
    %v2281 = vld [vmem:[%s11 + $0xa8] sm:$0xff]
    %v2282 = vld [vmem:[%s11 + $0xb0] sm:$0xff]
    %v2283 = vld [vmem:[%s11 + $0xb8] sm:$0xff]
    %v2284 = vld [vmem:[%s11 + $0xc0] sm:$0xff]
    %v2285 = vld [vmem:[%s11 + $0xc8] sm:$0xff]
    %v2286 = vld [vmem:[%s11 + $0xd0] sm:$0xff]
    %v2287 = vld [vmem:[%s11 + $0xd8] sm:$0xff]
    %v2288 = vld [vmem:[%s11 + $0xe0] sm:$0xff]
    %v2289 = vld [vmem:[%s11 + $0xe8] sm:$0xff]
    %v2290 = vld [vmem:[%s11 + $0xf0] sm:$0xff]
    %v2291 = vld [vmem:[%s11 + $0xf8] sm:$0xff]
    %vm2296 = vcmask 1041409
    %v2297 = vsel %vm2296, %v2253, %v2241
    %v2298 = vsel %vm2296, %v2259, %v2247
    %2301 = vmatprep.subr.mxu0 0.0
    %2302 = vmatpush1.msra.mxu0 %v2260
    %2303 = vmatprep.subr.mxu0 0.0
    %2304 = vmatpush1.msra.mxu0 %v2261
    %2305 = vmatprep.subr.mxu0 0.0
    %2306 = vmatpush1.msra.mxu0 %v2262
    %2307 = vmatprep.subr.mxu0 0.0
    %2308 = vmatpush1.msra.mxu0 %v2263
    %2309 = vmatprep.subr.mxu0 0.0
    %2310 = vmatpush1.msra.mxu0 %v2264
    %2311 = vmatprep.subr.mxu0 0.0
    %2312 = vmatpush1.msra.mxu0 %v2265
    %2313 = vmatprep.subr.mxu0 0.0
    %2314 = vmatpush1.msra.mxu0 %v2266
    %2315 = vmatprep.subr.mxu0 0.0
    %2316 = vmatpush1.msra.mxu0 %v2267
    %2317 = vmatprep.subr.mxu0 0.0
    %2318 = vmatpush1.msra.mxu0 %v2268
    %2319 = vmatprep.subr.mxu0 0.0
    %2320 = vmatpush1.msra.mxu0 %v2269
    %2321 = vmatprep.subr.mxu0 0.0
    %2322 = vmatpush1.msra.mxu0 %v2270
    %2323 = vmatprep.subr.mxu0 0.0
    %2324 = vmatpush1.msra.mxu0 %v2271
    %2325 = vmatprep.subr.mxu0 0.0
    %2326 = vmatpush1.msra.mxu0 %v2272
    %2327 = vmatprep.subr.mxu0 0.0
    %2328 = vmatpush1.msra.mxu0 %v2273
    %2329 = vmatprep.subr.mxu0 0.0
    %2330 = vmatpush1.msra.mxu0 %v2274
    %2331 = vmatprep.subr.mxu0 0.0
    %2332 = vmatpush1.msra.mxu0 %v2275
    %2333 = vmatprep.subr.mxu0 0.0
    %2334 = vmatpush1.msra.mxu0 %v2276
    %2335 = vmatprep.subr.mxu0 0.0
    %2336 = vmatpush1.msra.mxu0 %v2277
    %2337 = vmatprep.subr.mxu0 0.0
    %2338 = vmatpush1.msra.mxu0 %v2278
    %2339 = vmatprep.subr.mxu0 0.0
    %2340 = vmatpush1.msra.mxu0 %v2279
    %2341 = vmatprep.subr.mxu0 0.0
    %2342 = vmatpush1.msra.mxu0 %v2280
    %2343 = vmatprep.subr.mxu0 0.0
    %2344 = vmatpush1.msra.mxu0 %v2281
    %2345 = vmatprep.subr.mxu0 0.0
    %2346 = vmatpush1.msra.mxu0 %v2282
    %2347 = vmatprep.subr.mxu0 0.0
    %2348 = vmatpush1.msra.mxu0 %v2283
    %2349 = vmatprep.subr.mxu0 0.0
    %2350 = vmatpush1.msra.mxu0 %v2284
    %2351 = vmatprep.subr.mxu0 0.0
    %2352 = vmatpush1.msra.mxu0 %v2285
    %2353 = vmatprep.subr.mxu0 0.0
    %2354 = vmatpush1.msra.mxu0 %v2286
    %2355 = vmatprep.subr.mxu0 0.0
    %2356 = vmatpush1.msra.mxu0 %v2287
    %2357 = vmatprep.subr.mxu0 0.0
    %2358 = vmatpush1.msra.mxu0 %v2288
    %2359 = vmatprep.subr.mxu0 0.0
    %2360 = vmatpush1.msra.mxu0 %v2289
    %2361 = vmatprep.subr.mxu0 0.0
    %2362 = vmatpush1.msra.mxu0 %v2290
    %2363 = vmatprep.subr.mxu0 0.0
    %2364 = vmatpush1.msra.mxu0 %v2291
    %2365 = vmatprep.mubr.f32.mxu0 %v2298
    %2366 = vmatmul.mubr.f32.gmra.mrb[0].mxu0 %v2297
    %v2367 = vpop.f32.mrb[0].mxu0
    %v2368 = vadd.f32 0.0, %v2367
    %v2369 = vpop.f32.mrb[0].mxu0
    %2370 = vdwg.mxu0
    %v2371 = vmul.f32 %v2368, 0.015625
    %v2372 = vld [vmem:[%s12] sm:$0x1]
    %v2374 = vlaneseq
    %v2375 = vshrl.u32 %v2374, 7
    %v2376 = vsub.s32 0, %v2375
    %v2377 = vrot.slane %v2372, %v2376
    %v2379 = vadd.f32 %v2371, %v2377
    %vm2380 = vcmp.gt.f32.partialorder %v2379, 0.0
    %v2381 = vstv %s111
    %v2382 = vmul.f32 %v2381, %v2379
    %v2383 = vsel %vm2380, %v2379, %v2382
    %v2384 = vld [vmem:[%s13] sm:$0xf]
    %v2385 = vld [vmem:[%s14] sm:$0x3]
    %v2387 = vlaneseq
    %v2388 = vshrl.u32 %v2387, 7
    %v2389 = vsub.s32 0, %v2388
    %v2390 = vrot.slane %v2385, %v2389
    %v2391 = vlaneseq
    %v2392 = vshrl.u32 %v2391, 7
    %v2393 = vsub.s32 1, %v2392
    %v2394 = vrot.slane %v2385, %v2393
    %v2399 = vunpack.c.l.s4 1983009808
    %v2400 = vunpack.c.0.s8 %v2399
    %v2401 = vlaneseq
    %v2402 = vshrl.u32 %v2401, 7
    %v2403 = vsub.s32 %v2400, %v2402
    %v2404 = vrot.slane %v2384, %v2403
    %v2405 = vcombine.high %v2404, %v2404
    %vm2406 = vcmask 15360
    %v2408 = vsel %vm2406, %v2383, 0
    %vm2410 = vcmask 1041408
    %v2411 = vsel %vm2410, %v2404, 0
    %v2413 = vsel %vm2410, %v2405, 0
    %2415 = vmatprep.subr.mxu0 %v2413
    %2416 = vmatpush1.msra.mxu0 %v2411
    %2417 = vmatprep.subr.mxu0 0.0
    %2418 = vmatpush1.msra.mxu0 0.0
    %2419 = vmatprep.subr.mxu0 0.0
    %2420 = vmatpush1.msra.mxu0 0.0
    %2421 = vmatprep.subr.mxu0 0.0
    %2422 = vmatpush1.msra.mxu0 0.0
    %2423 = vmatprep.subr.mxu0 0.0
    %2424 = vmatpush1.msra.mxu0 0.0
    %2425 = vmatprep.subr.mxu0 0.0
    %2426 = vmatpush1.msra.mxu0 0.0
    %2427 = vmatprep.subr.mxu0 0.0
    %2428 = vmatpush1.msra.mxu0 0.0
    %2429 = vmatprep.subr.mxu0 0.0
    %2430 = vmatpush1.msra.mxu0 0.0
    %2431 = vmatprep.subr.mxu0 0.0
    %2432 = vmatpush1.msra.mxu0 0.0
    %2433 = vmatprep.subr.mxu0 0.0
    %2434 = vmatpush1.msra.mxu0 0.0
    %2435 = vmatprep.subr.mxu0 0.0
    %2436 = vmatpush1.msra.mxu0 0.0
    %2437 = vmatprep.subr.mxu0 0.0
    %2438 = vmatpush1.msra.mxu0 0.0
    %2439 = vmatprep.subr.mxu0 0.0
    %2440 = vmatpush1.msra.mxu0 0.0
    %2441 = vmatprep.subr.mxu0 0.0
    %2442 = vmatpush1.msra.mxu0 0.0
    %2443 = vmatprep.subr.mxu0 0.0
    %2444 = vmatpush1.msra.mxu0 0.0
    %2445 = vmatprep.subr.mxu0 0.0
    %2446 = vmatpush1.msra.mxu0 0.0
    %2447 = vmatprep.subr.mxu0 0.0
    %2448 = vmatpush1.msra.mxu0 0.0
    %2449 = vmatprep.subr.mxu0 0.0
    %2450 = vmatpush1.msra.mxu0 0.0
    %2451 = vmatprep.subr.mxu0 0.0
    %2452 = vmatpush1.msra.mxu0 0.0
    %2453 = vmatprep.subr.mxu0 0.0
    %2454 = vmatpush1.msra.mxu0 0.0
    %2455 = vmatprep.subr.mxu0 0.0
    %2456 = vmatpush1.msra.mxu0 0.0
    %2457 = vmatprep.subr.mxu0 0.0
    %2458 = vmatpush1.msra.mxu0 0.0
    %2459 = vmatprep.subr.mxu0 0.0
    %2460 = vmatpush1.msra.mxu0 0.0
    %2461 = vmatprep.subr.mxu0 0.0
    %2462 = vmatpush1.msra.mxu0 0.0
    %2463 = vmatprep.subr.mxu0 0.0
    %2464 = vmatpush1.msra.mxu0 0.0
    %2465 = vmatprep.subr.mxu0 0.0
    %2466 = vmatpush1.msra.mxu0 0.0
    %2467 = vmatprep.subr.mxu0 0.0
    %2468 = vmatpush1.msra.mxu0 0.0
    %2469 = vmatprep.subr.mxu0 0.0
    %2470 = vmatpush1.msra.mxu0 0.0
    %2471 = vmatprep.subr.mxu0 0.0
    %2472 = vmatpush1.msra.mxu0 0.0
    %2473 = vmatprep.subr.mxu0 0.0
    %2474 = vmatpush1.msra.mxu0 0.0
    %2475 = vmatprep.subr.mxu0 0.0
    %2476 = vmatpush1.msra.mxu0 0.0
    %2477 = vmatprep.subr.mxu0 0.0
    %2478 = vmatpush1.msra.mxu0 0.0
    %2479 = vmatprep.mubr.f32.mxu0 0.0
    %2480 = vmatmul.mubr.f32.gmra.mrb[0].mxu0 %v2408
    %v2481 = vpop.f32.mrb[0].mxu0
    %v2482 = vadd.f32 %v2390, %v2481
    %v2483 = vpop.f32.mrb[0].mxu0
    %v2484 = vadd.f32 %v2394, %v2483
    %2485 = vdwg.mxu0
    %v2486 = vxor.u32 %v2482, 2147483648
    %v2487 = vxor.u32 %v2484, 2147483648
    %v2488 = vmul.f32 %v2486, 1.442695
    %v2489 = vpow.pop %v2488
    %v2490 = vmul.f32 %v2487, 1.442695
    %v2491 = vpow.pop %v2490
    %v2492 = vadd.f32 %v2489, 1.0
    %v2493 = vadd.f32 %v2491, 1.0
    %v2494 = vrcp.pop %v2492
    %v2495 = vmul.f32 1.0, %v2494
    %v2496 = vrcp.pop %v2493
    %v2497 = vmul.f32 1.0, %v2496
    %v2500 = vcombine.low %v2495, %v2497
    %v2502 = vunpack.c.l.s4 1966171168
    %v2503 = vunpack.c.0.s8 %v2502
    %v2504 = vlaneseq
    %v2505 = vshrl.u32 %v2504, 7
    %v2506 = vsub.s32 %v2503, %v2505
    %v2507 = vrot.slane %v2500, %v2506
    %v2508 = vcombine.high %v2507, %v2507
    %v2510 = vunpack.c.l.s4 1966171168
    %v2511 = vunpack.c.0.s8 %v2510
    %v2512 = vlaneseq
    %v2513 = vshrl.u32 %v2512, 7
    %v2514 = vsub.s32 %v2511, %v2513
    %v2515 = vrot.slane %v2507, %v2514
    %v2517 = vunpack.c.l.s4 1966171168
    %v2518 = vunpack.c.0.s8 %v2517
    %v2519 = vlaneseq
    %v2520 = vshrl.u32 %v2519, 7
    %v2521 = vsub.s32 %v2518, %v2520
    %v2522 = vrot.slane %v2508, %v2521
    %v2523 = vlaneseq
    %v2524 = vshrl.u32 %v2523, 7
    %v2525 = vsub.s32 0, %v2524
    %v2526 = vrot.slane %v2515, %v2525
    %v2527 = vlaneseq
    %v2528 = vshrl.u32 %v2527, 7
    %v2529 = vsub.s32 1, %v2528
    %v2530 = vrot.slane %v2515, %v2529
    %v2531 = vlaneseq
    %v2532 = vshrl.u32 %v2531, 7
    %v2533 = vsub.s32 0, %v2532
    %v2534 = vrot.slane %v2522, %v2533
    %v2535 = vlaneseq
    %v2536 = vshrl.u32 %v2535, 7
    %v2537 = vsub.s32 1, %v2536
    %v2538 = vrot.slane %v2522, %v2537
    %v2543 = vmul.f32 %v2232, %v2526
    %v2544 = vmul.f32 %v2233, %v2530
    %v2545 = vmul.f32 %v2234, %v2534
    %v2546 = vmul.f32 %v2235, %v2538
    %v2547 = vadd.f32 %v2543, %v560
    %v2548 = vadd.f32 %v2544, %v561
    %v2549 = vadd.f32 %v2545, %v562
    %v2550 = vadd.f32 %v2546, %v563
    %2551 = vst [vmem:[#allocation10] sm:$0xff] %v2547
    %2552 = vst [vmem:[#allocation10 + $0x8] sm:$0xff] %v2548
    %2553 = vst [vmem:[#allocation10 + $0x10] sm:$0xff] %v2549
    %2554 = vst [vmem:[#allocation10 + $0x18] sm:$0xff] %v2550
    // Predicated region
    $region94: #{residual_block_forward_lane.1} parent=1 // pred_check
      _
    $region95: #{residual_block_forward_lane.1} parent=1 // pred_check_branch
      %2556 = sbr.rel (0) target = $region97
    $region96: #{residual_block_forward_lane.1} parent=1 // pred_region
      %s2558 = ssub.s32 512, 512
      %2559 = vsyncadd [#allocation6], %s2558
      %s2560 = sshll.u32 [#allocation10], 4
      %s2561 = int_to_ptr.vmem [resolvable:$true] %s2560
      %2566 = dma.vmem_to_hbm [thread:$0]  %s2561, 512, %s20, [#allocation6], 256, 256, 16
    $region97: #{residual_block_forward_lane.1} parent=1 // pred_fallthru
      _
    // Predicated region
    $region98: #{residual_block_forward_lane.1} parent=1 // pred_check
      _
    $region99: #{residual_block_forward_lane.1} parent=1 // pred_check_branch
      %2568 = sbr.rel (0) target = $region101
    $region100: #{residual_block_forward_lane.1} parent=1 // pred_region
      %2569 = dma.done [#allocation6], 512
    $region101: #{residual_block_forward_lane.1} parent=1 // pred_fallthru
      _
    %2570 = vsyncpa [#allocation5], 1
    %2571 = vsyncpa [#allocation8], 1
    %2572 = vsyncpa [#allocation6], 1

</llo_original>
